<compile_context>
chip_gen: v5e
topology: v5e:2x2
jax: 0.10.0
libtpu: 0.0.40
codegen_flags: <defaults>
</compile_context>

<pallas_src>
import jax
import jax.numpy as jnp
from jax.experimental import pallas as pl
from jax.experimental.pallas import tpu as pltpu

LN_EPS = 1e-5  # torch.nn.LayerNorm default


def _round_up(x, m):
    return ((x + m - 1) // m) * m


def _critic_kernel(obs_ref, z_ref, act_ref,                      # activations (per-tile)
                   w0o_ref, w0z_ref, w0a_ref, b0_ref, g_ref, beta_ref,  # trunk
                   wA_ref, bA_ref,                               # fused [F1|F2] first layer
                   wB_ref, bB_ref,                               # block-diag [F1|F2] second layer
                   out_ref):
    cdt = wA_ref.dtype  # matmul operand dtype (bf16 or f32)

    # ---- trunk: Linear (concat fused into 3 row-block matmuls) -> LayerNorm -> Tanh ----
    x = (jnp.dot(obs_ref[...].astype(cdt), w0o_ref[...], preferred_element_type=jnp.float32)
         + jnp.dot(z_ref[...].astype(cdt), w0z_ref[...], preferred_element_type=jnp.float32)
         + jnp.dot(act_ref[...].astype(cdt), w0a_ref[...], preferred_element_type=jnp.float32)
         + b0_ref[...])
    mu = jnp.mean(x, axis=-1, keepdims=True)
    xc = x - mu
    var = jnp.mean(xc * xc, axis=-1, keepdims=True)        # two-pass, biased (torch)
    x = jnp.tanh(xc * jax.lax.rsqrt(var + LN_EPS) * g_ref[...] + beta_ref[...]).astype(cdt)

    # ---- fused F1|F2 first layer: Linear -> ReLU (one MXU push, N = 2*hidden) ----
    hA = jnp.dot(x, wA_ref[...], preferred_element_type=jnp.float32) + bA_ref[...]
    hA = jnp.maximum(hA, 0.0).astype(cdt)

    # ---- block-diagonal second layer -> single lane-dense store (tile, out_pad) ----
    out_ref[...] = (jnp.dot(hA, wB_ref[...], preferred_element_type=jnp.float32)
                    + bB_ref[...]).astype(out_ref.dtype)


def prepare_params(p, obs_dim, z_dim, action_dim, *, use_bf16=True, lane_pad=128):
    """Fuse the two heads' weights once (not per call), split the trunk weight
    into row blocks matching [obs | z | action], and pick the matmul dtype."""
    cdt = jnp.bfloat16 if use_bf16 else jnp.float32
    hidden = p["w1a"].shape[0]
    out_pad = _round_up(2 * z_dim, lane_pad)

    # trunk weight split along its input rows (== no wrapper concat needed)
    w0 = p["w0"]
    w0o = w0[:obs_dim]
    w0z = w0[obs_dim:obs_dim + z_dim]
    w0a = w0[obs_dim + z_dim:obs_dim + z_dim + action_dim]

    # fused first layers: [hidden, 2*hidden]
    # TODO(synk): for hidden >= ~2048, N-tile wA with a second grid axis so it
    # fits v7x's 64 MiB VMEM; unnecessary at the default sizes.
    wA = jnp.concatenate([p["w1a"], p["w2a"]], axis=1)
    bA = jnp.concatenate([p["b1a"], p["b2a"]], axis=1)

    # block-diagonal second layers, padded on the out dim to a lane-dense width
    zeros_hz = jnp.zeros((hidden, z_dim), jnp.float32)
    wB = jnp.concatenate(
        [jnp.concatenate([p["w1b"], zeros_hz], axis=1),
         jnp.concatenate([zeros_hz, p["w2b"]], axis=1)], axis=0)  # [2*hidden, 2*z_dim]
    wB = jnp.pad(wB, ((0, 0), (0, out_pad - 2 * z_dim)))
    bB = jnp.concatenate([p["b1b"], p["b2b"]], axis=1)
    bB = jnp.pad(bB, ((0, 0), (0, out_pad - 2 * z_dim)))

    return {
        "w0o": w0o.astype(cdt), "w0z": w0z.astype(cdt), "w0a": w0a.astype(cdt),
        "b0": p["b0"], "gamma": p["gamma"], "beta": p["beta"],
        "wA": wA.astype(cdt), "bA": bA,
        "wB": wB.astype(cdt), "bB": bB,
    }


def critic_forward(obs, z, action, fused, *, batch_tile=None):
    """Pallas-backed Critic.forward (preprocess=False path) on fused params."""
    z_dim = z.shape[-1]
    compute_dtype = fused["wA"].dtype
    is_bf16 = compute_dtype == jnp.bfloat16
    out_dtype = jnp.bfloat16 if is_bf16 else jnp.float32
    out_itemsize = 2 if is_bf16 else 4

    B = obs.shape[0]
    obs_dim, act_dim = obs.shape[1], action.shape[1]
    in_dim = obs_dim + z_dim + act_dim
    hidden = fused["wA"].shape[0]
    out_pad = fused["wB"].shape[1]

    # ---- batch tiling (generation-aware heuristic) ----
    sub = 16 if is_bf16 else 8                     # sublane packing of the matmul dtype
    if batch_tile is None:
        if B <= 128:
            batch_tile = _round_up(B, sub)         # one fat step (v5e/v6e single TC)
        else:
            # >= 2 grid steps so ('parallel',) can feed both v7x TensorCores,
            # capped at 512 rows (v5e/v6e sweet spot, v7x 64 MiB VMEM friendly).
            batch_tile = min(512, _round_up(pl.cdiv(B, 2), sub))
    assert batch_tile % sub == 0, f"batch_tile must be a multiple of {sub} for {compute_dtype}"

    padded_B = _round_up(B, batch_tile)

    def pad_rows(a):
        return a if padded_B == B else jnp.pad(a, ((0, padded_B - B), (0, 0)))

    obs_p, z_p, act_p = pad_rows(obs), pad_rows(z), pad_rows(action)
    grid = (padded_B // batch_tile,)

    weight_keys = ("w0o", "w0z", "w0a", "b0", "gamma", "beta", "wA", "bA", "wB", "bB")
    weights = [fused[k] for k in weight_keys]
    weight_bytes = sum(int(w.size) * w.dtype.itemsize for w in weights)

    def act_spec(a):
        return pl.BlockSpec((batch_tile, a.shape[1]), lambda i: (i, 0))

    def const_spec(a, single_buffer):
        if single_buffer:
            # grid-invariant constants: single-buffer to halve their VMEM footprint
            return pl.BlockSpec(a.shape, lambda i: (0, 0), pipeline_mode=pl.Buffered(1))
        return pl.BlockSpec(a.shape, lambda i: (0, 0))

    # advisory cost hint for the XLA scheduler
    flops = 2 * padded_B * (in_dim * hidden + hidden * (2 * hidden) + (2 * hidden) * out_pad)
    bytes_accessed = (sum(int(a.size) * a.dtype.itemsize for a in (obs_p, z_p, act_p))
                      + padded_B * out_pad * out_itemsize + weight_bytes)
    cost = pl.CostEstimate(flops=flops, transcendentals=padded_B * hidden,
                           bytes_accessed=bytes_accessed)

    def build(single_buffer_weights):
        wbytes = weight_bytes * (1 if single_buffer_weights else 2)
        dma_bytes = 2 * batch_tile * (4 * in_dim + out_itemsize * out_pad)   # double-buffered acts/out
        scratch = 4 * batch_tile * (hidden + 2 * hidden + out_pad)           # f32 temporaries
        vmem_limit = min(64 << 20, 2 * (wbytes + dma_bytes + scratch) + (8 << 20))
        return pl.pallas_call(
            _critic_kernel,
            out_shape=jax.ShapeDtypeStruct((padded_B, out_pad), out_dtype),
            grid_spec=pltpu.PrefetchScalarGridSpec(
                num_scalar_prefetch=0,
                grid=grid,
                in_specs=[act_spec(obs_p), act_spec(z_p), act_spec(act_p)]
                         + [const_spec(w, single_buffer_weights) for w in weights],
                out_specs=pl.BlockSpec((batch_tile, out_pad), lambda i: (i, 0)),
            ),
            compiler_params=pltpu.CompilerParams(
                dimension_semantics=("parallel",),
                vmem_limit_bytes=int(vmem_limit)),
            cost_estimate=cost,
        )

    args = (obs_p, z_p, act_p, *weights)
    try:
        out = build(True)(*args)
    except Exception:
        # pl.Buffered(1) unsupported on this jax/Mosaic -> default double-buffering
        out = build(False)(*args)

    f1 = out[:B, :z_dim].astype(jnp.float32)
    f2 = out[:B, z_dim:2 * z_dim].astype(jnp.float32)
    return f1, f2


def init_params(key, obs_dim, z_dim, action_dim, hidden_dim):
    """Deterministic synthetic weights (shapes match the PyTorch module)."""
    in_dim = obs_dim + z_dim + action_dim
    ks = jax.random.split(key, 8)

    def lin(k, fan_in, fan_out):
        scale = 1.0 / jnp.sqrt(jnp.float32(fan_in))
        return jax.random.normal(k, (fan_in, fan_out), jnp.float32) * scale

    return {
        # trunk = mlp(in_dim, hidden, 'ntanh'): Linear + LayerNorm(hidden) + Tanh
        "w0": lin(ks[0], in_dim, hidden_dim),
        "b0": jax.random.normal(ks[1], (1, hidden_dim), jnp.float32) * 0.01,
        "gamma": jnp.ones((1, hidden_dim), jnp.float32),
        "beta": jnp.zeros((1, hidden_dim), jnp.float32),
        # F1 = mlp(hidden, hidden, 'irelu', z_dim)
        "w1a": lin(ks[2], hidden_dim, hidden_dim),
        "b1a": jax.random.normal(ks[3], (1, hidden_dim), jnp.float32) * 0.01,
        "w1b": lin(ks[4], hidden_dim, z_dim),
        "b1b": jnp.zeros((1, z_dim), jnp.float32),
        # F2 = mlp(hidden, hidden, 'irelu', z_dim)
        "w2a": lin(ks[5], hidden_dim, hidden_dim),
        "b2a": jax.random.normal(ks[6], (1, hidden_dim), jnp.float32) * 0.01,
        "w2b": lin(ks[7], hidden_dim, z_dim),
        "b2b": jnp.zeros((1, z_dim), jnp.float32),
    }


def critic_forward_ref(obs, z, action, p, compute_dtype=jnp.float32):
    """Pure-JAX reference (optionally emulating bf16 matmul operands)."""
    cast = lambda a: a.astype(compute_dtype)
    h = jnp.concatenate([obs, z, action], axis=-1)
    x = jnp.dot(cast(h), cast(p["w0"]),
                preferred_element_type=jnp.float32) + p["b0"]
    mu = jnp.mean(x, -1, keepdims=True)
    var = jnp.mean((x - mu) ** 2, -1, keepdims=True)
    x = (x - mu) / jnp.sqrt(var + LN_EPS) * p["gamma"] + p["beta"]
    x = jnp.tanh(x).astype(compute_dtype)
    h1 = jnp.maximum(jnp.dot(x, cast(p["w1a"]),
                             preferred_element_type=jnp.float32) + p["b1a"], 0.0)
    f1 = jnp.dot(h1.astype(compute_dtype), cast(p["w1b"]),
                 preferred_element_type=jnp.float32) + p["b1b"]
    h2 = jnp.maximum(jnp.dot(x, cast(p["w2a"]),
                             preferred_element_type=jnp.float32) + p["b2a"], 0.0)
    f2 = jnp.dot(h2.astype(compute_dtype), cast(p["w2b"]),
                 preferred_element_type=jnp.float32) + p["b2b"]
    return f1, f2


if __name__ == "__main__":
    # TODO(synk): preprocess=True branch (obs_action_net / obs_z_net) not implemented;
    # default Critic config uses preprocess=False, which is what this kernel covers.
    obs_dim, z_dim, action_dim, hidden_dim = 24, 10, 6, 32
    B = 16

    key = jax.random.PRNGKey(0)
    k_obs, k_z, k_act, k_par = jax.random.split(key, 4)
    obs = jax.random.normal(k_obs, (B, obs_dim), jnp.float32)
    zvec = jax.random.normal(k_z, (B, z_dim), jnp.float32)
    action = jax.random.normal(k_act, (B, action_dim), jnp.float32)
    params = init_params(k_par, obs_dim, z_dim, action_dim, hidden_dim)

    # ---- f32 matmul path: strict check against the pure-JAX reference ----
    fused_f32 = prepare_params(params, obs_dim, z_dim, action_dim, use_bf16=False)
    f1, f2 = critic_forward(obs, zvec, action, fused_f32)
    jax.block_until_ready((f1, f2))
    f1_ref, f2_ref = critic_forward_ref(obs, zvec, action, params)
    assert f1.shape == (B, z_dim) and f2.shape == (B, z_dim)
    assert jnp.allclose(f1, f1_ref, atol=1e-4, rtol=1e-4)
    assert jnp.allclose(f2, f2_ref, atol=1e-4, rtol=1e-4)

    # ---- bf16 matmul path (default): check against a bf16-emulated reference ----
    fused_bf16 = prepare_params(params, obs_dim, z_dim, action_dim, use_bf16=True)
    g1, g2 = critic_forward(obs, zvec, action, fused_bf16)
    jax.block_until_ready((g1, g2))
    g1_ref, g2_ref = critic_forward_ref(obs, zvec, action, params,
                                        compute_dtype=jnp.bfloat16)
    assert jnp.allclose(g1, g1_ref, atol=1e-2, rtol=1e-2)
    assert jnp.allclose(g2, g2_ref, atol=1e-2, rtol=1e-2)
    # sanity vs. full-precision reference (bf16 quantization tolerance)
    assert jnp.allclose(g1, f1_ref, atol=5e-2, rtol=5e-2)
    assert jnp.allclose(g2, f2_ref, atol=5e-2, rtol=5e-2)

    print("KERNEL_OK")
</pallas_src>

<mosaic_0001>
module attributes {stable_mosaic.version = 11 : i64} {
  func.func @_critic_kernel(%arg0: i32, %arg1: memref<16x24xf32, #tpu.memory_space<vmem>>, %arg2: memref<16x10xf32, #tpu.memory_space<vmem>>, %arg3: memref<16x6xf32, #tpu.memory_space<vmem>>, %arg4: memref<24x32xf32, #tpu.memory_space<vmem>>, %arg5: memref<10x32xf32, #tpu.memory_space<vmem>>, %arg6: memref<6x32xf32, #tpu.memory_space<vmem>>, %arg7: memref<1x32xf32, #tpu.memory_space<vmem>>, %arg8: memref<1x32xf32, #tpu.memory_space<vmem>>, %arg9: memref<1x32xf32, #tpu.memory_space<vmem>>, %arg10: memref<32x64xf32, #tpu.memory_space<vmem>>, %arg11: memref<1x64xf32, #tpu.memory_space<vmem>>, %arg12: memref<64x128xf32, #tpu.memory_space<vmem>>, %arg13: memref<1x128xf32, #tpu.memory_space<vmem>>, %arg14: memref<16x128xf32, #tpu.memory_space<vmem>>) attributes {dimension_semantics = [#tpu.dimension_semantics<parallel>], iteration_bounds = array<i64: 1>, scalar_prefetch = 0 : i64, scratch_operands = 0 : i64, tpu.core_type = #tpu.core_type<tc>, window_params = [{transform_indices = @transform_0, window_bounds = array<i64: 16, 24>}, {transform_indices = @transform_1, window_bounds = array<i64: 16, 10>}, {transform_indices = @transform_2, window_bounds = array<i64: 16, 6>}, {pipeline_mode = #tpu.pipeline_mode<synchronous>, transform_indices = @transform_3, window_bounds = array<i64: 24, 32>}, {pipeline_mode = #tpu.pipeline_mode<synchronous>, transform_indices = @transform_4, window_bounds = array<i64: 10, 32>}, {pipeline_mode = #tpu.pipeline_mode<synchronous>, transform_indices = @transform_5, window_bounds = array<i64: 6, 32>}, {pipeline_mode = #tpu.pipeline_mode<synchronous>, transform_indices = @transform_6, window_bounds = array<i64: 1, 32>}, {pipeline_mode = #tpu.pipeline_mode<synchronous>, transform_indices = @transform_7, window_bounds = array<i64: 1, 32>}, {pipeline_mode = #tpu.pipeline_mode<synchronous>, transform_indices = @transform_8, window_bounds = array<i64: 1, 32>}, {pipeline_mode = #tpu.pipeline_mode<synchronous>, transform_indices = @transform_9, window_bounds = array<i64: 32, 64>}, {pipeline_mode = #tpu.pipeline_mode<synchronous>, transform_indices = @transform_10, window_bounds = array<i64: 1, 64>}, {pipeline_mode = #tpu.pipeline_mode<synchronous>, transform_indices = @transform_11, window_bounds = array<i64: 64, 128>}, {pipeline_mode = #tpu.pipeline_mode<synchronous>, transform_indices = @transform_12, window_bounds = array<i64: 1, 128>}, {transform_indices = @transform_13, window_bounds = array<i64: 16, 128>}]} {
    %c0 = arith.constant 0 : index
    %c0_0 = arith.constant 0 : index
    %0 = vector.load %arg1[%c0, %c0_0] : memref<16x24xf32, #tpu.memory_space<vmem>>, vector<16x24xf32>
    %c0_1 = arith.constant 0 : index
    %c0_2 = arith.constant 0 : index
    %1 = vector.load %arg4[%c0_1, %c0_2] : memref<24x32xf32, #tpu.memory_space<vmem>>, vector<24x32xf32>
    %cst = arith.constant dense<0.000000e+00> : vector<16x32xf32>
    %2 = tpu.matmul %0, %1, %cst {dimension_numbers = #tpu.dot_dimension_numbers<[1], [0], [0], [1], [0, 0, 1, 1], [], []>} : vector<16x24xf32>, vector<24x32xf32>, vector<16x32xf32> -> vector<16x32xf32>
    %c0_3 = arith.constant 0 : index
    %c0_4 = arith.constant 0 : index
    %3 = vector.load %arg2[%c0_3, %c0_4] : memref<16x10xf32, #tpu.memory_space<vmem>>, vector<16x10xf32>
    %c0_5 = arith.constant 0 : index
    %c0_6 = arith.constant 0 : index
    %4 = vector.load %arg5[%c0_5, %c0_6] : memref<10x32xf32, #tpu.memory_space<vmem>>, vector<10x32xf32>
    %cst_7 = arith.constant dense<0.000000e+00> : vector<16x32xf32>
    %5 = tpu.matmul %3, %4, %cst_7 {dimension_numbers = #tpu.dot_dimension_numbers<[1], [0], [0], [1], [0, 0, 1, 1], [], []>} : vector<16x10xf32>, vector<10x32xf32>, vector<16x32xf32> -> vector<16x32xf32>
    %6 = arith.addf %2, %5 : vector<16x32xf32>
    %c0_8 = arith.constant 0 : index
    %c0_9 = arith.constant 0 : index
    %7 = vector.load %arg3[%c0_8, %c0_9] : memref<16x6xf32, #tpu.memory_space<vmem>>, vector<16x6xf32>
    %c0_10 = arith.constant 0 : index
    %c0_11 = arith.constant 0 : index
    %8 = vector.load %arg6[%c0_10, %c0_11] : memref<6x32xf32, #tpu.memory_space<vmem>>, vector<6x32xf32>
    %cst_12 = arith.constant dense<0.000000e+00> : vector<16x32xf32>
    %9 = tpu.matmul %7, %8, %cst_12 {dimension_numbers = #tpu.dot_dimension_numbers<[1], [0], [0], [1], [0, 0, 1, 1], [], []>} : vector<16x6xf32>, vector<6x32xf32>, vector<16x32xf32> -> vector<16x32xf32>
    %10 = arith.addf %6, %9 : vector<16x32xf32>
    %c0_13 = arith.constant 0 : index
    %c0_14 = arith.constant 0 : index
    %11 = vector.load %arg7[%c0_13, %c0_14] : memref<1x32xf32, #tpu.memory_space<vmem>>, vector<1x32xf32>
    %12 = vector.broadcast %11 : vector<1x32xf32> to vector<16x32xf32>
    %13 = arith.addf %10, %12 : vector<16x32xf32>
    %cst_15 = arith.constant dense<0.000000e+00> : vector<16xf32>
    %14 = vector.multi_reduction <add>, %13, %cst_15 [1] : vector<16x32xf32> to vector<16xf32>
    %15 = vector.shape_cast %14 : vector<16xf32> to vector<16x1xf32>
    %cst_16 = arith.constant 3.200000e+01 : f32
    %16 = vector.broadcast %cst_16 : f32 to vector<16x1xf32>
    %17 = arith.divf %15, %16 : vector<16x1xf32>
    %18 = vector.broadcast %17 : vector<16x1xf32> to vector<16x32xf32>
    %19 = arith.subf %13, %18 : vector<16x32xf32>
    %20 = arith.mulf %19, %19 : vector<16x32xf32>
    %cst_17 = arith.constant dense<0.000000e+00> : vector<16xf32>
    %21 = vector.multi_reduction <add>, %20, %cst_17 [1] : vector<16x32xf32> to vector<16xf32>
    %22 = vector.shape_cast %21 : vector<16xf32> to vector<16x1xf32>
    %cst_18 = arith.constant 3.200000e+01 : f32
    %23 = vector.broadcast %cst_18 : f32 to vector<16x1xf32>
    %24 = arith.divf %22, %23 : vector<16x1xf32>
    %cst_19 = arith.constant 9.99999974E-6 : f32
    %25 = vector.broadcast %cst_19 : f32 to vector<16x1xf32>
    %26 = arith.addf %24, %25 : vector<16x1xf32>
    %27 = math.rsqrt %26 : vector<16x1xf32>
    %28 = vector.broadcast %27 : vector<16x1xf32> to vector<16x32xf32>
    %29 = arith.mulf %19, %28 : vector<16x32xf32>
    %c0_20 = arith.constant 0 : index
    %c0_21 = arith.constant 0 : index
    %30 = vector.load %arg8[%c0_20, %c0_21] : memref<1x32xf32, #tpu.memory_space<vmem>>, vector<1x32xf32>
    %31 = vector.broadcast %30 : vector<1x32xf32> to vector<16x32xf32>
    %32 = arith.mulf %29, %31 : vector<16x32xf32>
    %c0_22 = arith.constant 0 : index
    %c0_23 = arith.constant 0 : index
    %33 = vector.load %arg9[%c0_22, %c0_23] : memref<1x32xf32, #tpu.memory_space<vmem>>, vector<1x32xf32>
    %34 = vector.broadcast %33 : vector<1x32xf32> to vector<16x32xf32>
    %35 = arith.addf %32, %34 : vector<16x32xf32>
    %36 = math.tanh %35 : vector<16x32xf32>
    %c0_24 = arith.constant 0 : index
    %c0_25 = arith.constant 0 : index
    %37 = vector.load %arg10[%c0_24, %c0_25] : memref<32x64xf32, #tpu.memory_space<vmem>>, vector<32x64xf32>
    %cst_26 = arith.constant dense<0.000000e+00> : vector<16x64xf32>
    %38 = tpu.matmul %36, %37, %cst_26 {dimension_numbers = #tpu.dot_dimension_numbers<[1], [0], [0], [1], [0, 0, 1, 1], [], []>} : vector<16x32xf32>, vector<32x64xf32>, vector<16x64xf32> -> vector<16x64xf32>
    %c0_27 = arith.constant 0 : index
    %c0_28 = arith.constant 0 : index
    %39 = vector.load %arg11[%c0_27, %c0_28] : memref<1x64xf32, #tpu.memory_space<vmem>>, vector<1x64xf32>
    %40 = vector.broadcast %39 : vector<1x64xf32> to vector<16x64xf32>
    %41 = arith.addf %38, %40 : vector<16x64xf32>
    %cst_29 = arith.constant 0.000000e+00 : f32
    %42 = vector.broadcast %cst_29 : f32 to vector<16x64xf32>
    %43 = arith.maximumf %41, %42 : vector<16x64xf32>
    %c0_30 = arith.constant 0 : index
    %c0_31 = arith.constant 0 : index
    %44 = vector.load %arg12[%c0_30, %c0_31] : memref<64x128xf32, #tpu.memory_space<vmem>>, vector<64x128xf32>
    %cst_32 = arith.constant dense<0.000000e+00> : vector<16x128xf32>
    %45 = tpu.matmul %43, %44, %cst_32 {dimension_numbers = #tpu.dot_dimension_numbers<[1], [0], [0], [1], [0, 0, 1, 1], [], []>} : vector<16x64xf32>, vector<64x128xf32>, vector<16x128xf32> -> vector<16x128xf32>
    %c0_33 = arith.constant 0 : index
    %c0_34 = arith.constant 0 : index
    %46 = vector.load %arg13[%c0_33, %c0_34] : memref<1x128xf32, #tpu.memory_space<vmem>>, vector<1x128xf32>
    %47 = vector.broadcast %46 : vector<1x128xf32> to vector<16x128xf32>
    %48 = arith.addf %45, %47 : vector<16x128xf32>
    %c0_35 = arith.constant 0 : index
    %c0_36 = arith.constant 0 : index
    %49 = vector.load %arg14[%c0_35, %c0_36] : memref<16x128xf32, #tpu.memory_space<vmem>>, vector<16x128xf32>
    tpu.vector_store %arg14[%c0_35, %c0_36], %48 {strides = array<i32>} : memref<16x128xf32, #tpu.memory_space<vmem>>, vector<16x128xf32>,
    return
  }
  func.func @transform_0(%arg0: i32) -> (i32, i32) {
    %c0_i32 = arith.constant 0 : i32
    %c0_i32_0 = arith.constant 0 : i32
    return %arg0, %c0_i32 : i32, i32
  }
  func.func @transform_1(%arg0: i32) -> (i32, i32) {
    %c0_i32 = arith.constant 0 : i32
    %c0_i32_0 = arith.constant 0 : i32
    return %arg0, %c0_i32 : i32, i32
  }
  func.func @transform_2(%arg0: i32) -> (i32, i32) {
    %c0_i32 = arith.constant 0 : i32
    %c0_i32_0 = arith.constant 0 : i32
    return %arg0, %c0_i32 : i32, i32
  }
  func.func @transform_3(%arg0: i32) -> (i32, i32) {
    %c0_i32 = arith.constant 0 : i32
    %c0_i32_0 = arith.constant 0 : i32
    %c0_i32_1 = arith.constant 0 : i32
    return %c0_i32, %c0_i32_0 : i32, i32
  }
  func.func @transform_4(%arg0: i32) -> (i32, i32) {
    %c0_i32 = arith.constant 0 : i32
    %c0_i32_0 = arith.constant 0 : i32
    %c0_i32_1 = arith.constant 0 : i32
    return %c0_i32, %c0_i32_0 : i32, i32
  }
  func.func @transform_5(%arg0: i32) -> (i32, i32) {
    %c0_i32 = arith.constant 0 : i32
    %c0_i32_0 = arith.constant 0 : i32
    %c0_i32_1 = arith.constant 0 : i32
    return %c0_i32, %c0_i32_0 : i32, i32
  }
  func.func @transform_6(%arg0: i32) -> (i32, i32) {
    %c0_i32 = arith.constant 0 : i32
    %c0_i32_0 = arith.constant 0 : i32
    %c0_i32_1 = arith.constant 0 : i32
    return %c0_i32, %c0_i32_0 : i32, i32
  }
  func.func @transform_7(%arg0: i32) -> (i32, i32) {
    %c0_i32 = arith.constant 0 : i32
    %c0_i32_0 = arith.constant 0 : i32
    %c0_i32_1 = arith.constant 0 : i32
    return %c0_i32, %c0_i32_0 : i32, i32
  }
  func.func @transform_8(%arg0: i32) -> (i32, i32) {
    %c0_i32 = arith.constant 0 : i32
    %c0_i32_0 = arith.constant 0 : i32
    %c0_i32_1 = arith.constant 0 : i32
    return %c0_i32, %c0_i32_0 : i32, i32
  }
  func.func @transform_9(%arg0: i32) -> (i32, i32) {
    %c0_i32 = arith.constant 0 : i32
    %c0_i32_0 = arith.constant 0 : i32
    %c0_i32_1 = arith.constant 0 : i32
    return %c0_i32, %c0_i32_0 : i32, i32
  }
  func.func @transform_10(%arg0: i32) -> (i32, i32) {
    %c0_i32 = arith.constant 0 : i32
    %c0_i32_0 = arith.constant 0 : i32
    %c0_i32_1 = arith.constant 0 : i32
    return %c0_i32, %c0_i32_0 : i32, i32
  }
  func.func @transform_11(%arg0: i32) -> (i32, i32) {
    %c0_i32 = arith.constant 0 : i32
    %c0_i32_0 = arith.constant 0 : i32
    %c0_i32_1 = arith.constant 0 : i32
    return %c0_i32, %c0_i32_0 : i32, i32
  }
  func.func @transform_12(%arg0: i32) -> (i32, i32) {
    %c0_i32 = arith.constant 0 : i32
    %c0_i32_0 = arith.constant 0 : i32
    %c0_i32_1 = arith.constant 0 : i32
    return %c0_i32, %c0_i32_0 : i32, i32
  }
  func.func @transform_13(%arg0: i32) -> (i32, i32) {
    %c0_i32 = arith.constant 0 : i32
    %c0_i32_0 = arith.constant 0 : i32
    return %arg0, %c0_i32 : i32, i32
  }
}

module attributes {stable_mosaic.version = 11 : i64} {
  func.func @_critic_kernel(%arg0: i32, %arg1: memref<16x24xf32, #tpu.memory_space<vmem>>, %arg2: memref<16x10xf32, #tpu.memory_space<vmem>>, %arg3: memref<16x6xf32, #tpu.memory_space<vmem>>, %arg4: memref<24x32xf32, #tpu.memory_space<vmem>>, %arg5: memref<10x32xf32, #tpu.memory_space<vmem>>, %arg6: memref<6x32xf32, #tpu.memory_space<vmem>>, %arg7: memref<1x32xf32, #tpu.memory_space<vmem>>, %arg8: memref<1x32xf32, #tpu.memory_space<vmem>>, %arg9: memref<1x32xf32, #tpu.memory_space<vmem>>, %arg10: memref<32x64xf32, #tpu.memory_space<vmem>>, %arg11: memref<1x64xf32, #tpu.memory_space<vmem>>, %arg12: memref<64x128xf32, #tpu.memory_space<vmem>>, %arg13: memref<1x128xf32, #tpu.memory_space<vmem>>, %arg14: memref<16x128xf32, #tpu.memory_space<vmem>>) attributes {dimension_semantics = [#tpu.dimension_semantics<parallel>], iteration_bounds = array<i64: 1>, scalar_prefetch = 0 : i64, scratch_operands = 0 : i64, tpu.core_type = #tpu.core_type<tc>, window_params = [{transform_indices = @transform_0, window_bounds = array<i64: 16, 24>}, {transform_indices = @transform_1, window_bounds = array<i64: 16, 10>}, {transform_indices = @transform_2, window_bounds = array<i64: 16, 6>}, {pipeline_mode = #tpu.pipeline_mode<synchronous>, transform_indices = @transform_3, window_bounds = array<i64: 24, 32>}, {pipeline_mode = #tpu.pipeline_mode<synchronous>, transform_indices = @transform_4, window_bounds = array<i64: 10, 32>}, {pipeline_mode = #tpu.pipeline_mode<synchronous>, transform_indices = @transform_5, window_bounds = array<i64: 6, 32>}, {pipeline_mode = #tpu.pipeline_mode<synchronous>, transform_indices = @transform_6, window_bounds = array<i64: 1, 32>}, {pipeline_mode = #tpu.pipeline_mode<synchronous>, transform_indices = @transform_7, window_bounds = array<i64: 1, 32>}, {pipeline_mode = #tpu.pipeline_mode<synchronous>, transform_indices = @transform_8, window_bounds = array<i64: 1, 32>}, {pipeline_mode = #tpu.pipeline_mode<synchronous>, transform_indices = @transform_9, window_bounds = array<i64: 32, 64>}, {pipeline_mode = #tpu.pipeline_mode<synchronous>, transform_indices = @transform_10, window_bounds = array<i64: 1, 64>}, {pipeline_mode = #tpu.pipeline_mode<synchronous>, transform_indices = @transform_11, window_bounds = array<i64: 64, 128>}, {pipeline_mode = #tpu.pipeline_mode<synchronous>, transform_indices = @transform_12, window_bounds = array<i64: 1, 128>}, {transform_indices = @transform_13, window_bounds = array<i64: 16, 128>}]} {
    %c0 = arith.constant 0 : index
    %c0_0 = arith.constant 0 : index
    %0 = vector.load %arg1[%c0, %c0_0] : memref<16x24xf32, #tpu.memory_space<vmem>>, vector<16x24xf32>
    %c0_1 = arith.constant 0 : index
    %c0_2 = arith.constant 0 : index
    %1 = vector.load %arg4[%c0_1, %c0_2] : memref<24x32xf32, #tpu.memory_space<vmem>>, vector<24x32xf32>
    %cst = arith.constant dense<0.000000e+00> : vector<16x32xf32>
    %2 = tpu.matmul %0, %1, %cst {dimension_numbers = #tpu.dot_dimension_numbers<[1], [0], [0], [1], [0, 0, 1, 1], [], []>} : vector<16x24xf32>, vector<24x32xf32>, vector<16x32xf32> -> vector<16x32xf32>
    %c0_3 = arith.constant 0 : index
    %c0_4 = arith.constant 0 : index
    %3 = vector.load %arg2[%c0_3, %c0_4] : memref<16x10xf32, #tpu.memory_space<vmem>>, vector<16x10xf32>
    %c0_5 = arith.constant 0 : index
    %c0_6 = arith.constant 0 : index
    %4 = vector.load %arg5[%c0_5, %c0_6] : memref<10x32xf32, #tpu.memory_space<vmem>>, vector<10x32xf32>
    %cst_7 = arith.constant dense<0.000000e+00> : vector<16x32xf32>
    %5 = tpu.matmul %3, %4, %cst_7 {dimension_numbers = #tpu.dot_dimension_numbers<[1], [0], [0], [1], [0, 0, 1, 1], [], []>} : vector<16x10xf32>, vector<10x32xf32>, vector<16x32xf32> -> vector<16x32xf32>
    %6 = arith.addf %2, %5 : vector<16x32xf32>
    %c0_8 = arith.constant 0 : index
    %c0_9 = arith.constant 0 : index
    %7 = vector.load %arg3[%c0_8, %c0_9] : memref<16x6xf32, #tpu.memory_space<vmem>>, vector<16x6xf32>
    %c0_10 = arith.constant 0 : index
    %c0_11 = arith.constant 0 : index
    %8 = vector.load %arg6[%c0_10, %c0_11] : memref<6x32xf32, #tpu.memory_space<vmem>>, vector<6x32xf32>
    %cst_12 = arith.constant dense<0.000000e+00> : vector<16x32xf32>
    %9 = tpu.matmul %7, %8, %cst_12 {dimension_numbers = #tpu.dot_dimension_numbers<[1], [0], [0], [1], [0, 0, 1, 1], [], []>} : vector<16x6xf32>, vector<6x32xf32>, vector<16x32xf32> -> vector<16x32xf32>
    %10 = arith.addf %6, %9 : vector<16x32xf32>
    %c0_13 = arith.constant 0 : index
    %c0_14 = arith.constant 0 : index
    %11 = vector.load %arg7[%c0_13, %c0_14] : memref<1x32xf32, #tpu.memory_space<vmem>>, vector<1x32xf32>
    %12 = vector.broadcast %11 : vector<1x32xf32> to vector<16x32xf32>
    %13 = arith.addf %10, %12 : vector<16x32xf32>
    %cst_15 = arith.constant dense<0.000000e+00> : vector<16xf32>
    %14 = vector.multi_reduction <add>, %13, %cst_15 [1] : vector<16x32xf32> to vector<16xf32>
    %15 = vector.shape_cast %14 : vector<16xf32> to vector<16x1xf32>
    %cst_16 = arith.constant 3.200000e+01 : f32
    %16 = vector.broadcast %cst_16 : f32 to vector<16x1xf32>
    %17 = arith.divf %15, %16 : vector<16x1xf32>
    %18 = vector.broadcast %17 : vector<16x1xf32> to vector<16x32xf32>
    %19 = arith.subf %13, %18 : vector<16x32xf32>
    %20 = arith.mulf %19, %19 : vector<16x32xf32>
    %cst_17 = arith.constant dense<0.000000e+00> : vector<16xf32>
    %21 = vector.multi_reduction <add>, %20, %cst_17 [1] : vector<16x32xf32> to vector<16xf32>
    %22 = vector.shape_cast %21 : vector<16xf32> to vector<16x1xf32>
    %cst_18 = arith.constant 3.200000e+01 : f32
    %23 = vector.broadcast %cst_18 : f32 to vector<16x1xf32>
    %24 = arith.divf %22, %23 : vector<16x1xf32>
    %cst_19 = arith.constant 9.99999974E-6 : f32
    %25 = vector.broadcast %cst_19 : f32 to vector<16x1xf32>
    %26 = arith.addf %24, %25 : vector<16x1xf32>
    %27 = math.rsqrt %26 : vector<16x1xf32>
    %28 = vector.broadcast %27 : vector<16x1xf32> to vector<16x32xf32>
    %29 = arith.mulf %19, %28 : vector<16x32xf32>
    %c0_20 = arith.constant 0 : index
    %c0_21 = arith.constant 0 : index
    %30 = vector.load %arg8[%c0_20, %c0_21] : memref<1x32xf32, #tpu.memory_space<vmem>>, vector<1x32xf32>
    %31 = vector.broadcast %30 : vector<1x32xf32> to vector<16x32xf32>
    %32 = arith.mulf %29, %31 : vector<16x32xf32>
    %c0_22 = arith.constant 0 : index
    %c0_23 = arith.constant 0 : index
    %33 = vector.load %arg9[%c0_22, %c0_23] : memref<1x32xf32, #tpu.memory_space<vmem>>, vector<1x32xf32>
    %34 = vector.broadcast %33 : vector<1x32xf32> to vector<16x32xf32>
    %35 = arith.addf %32, %34 : vector<16x32xf32>
    %36 = math.tanh %35 : vector<16x32xf32>
    %c0_24 = arith.constant 0 : index
    %c0_25 = arith.constant 0 : index
    %37 = vector.load %arg10[%c0_24, %c0_25] : memref<32x64xf32, #tpu.memory_space<vmem>>, vector<32x64xf32>
    %cst_26 = arith.constant dense<0.000000e+00> : vector<16x64xf32>
    %38 = tpu.matmul %36, %37, %cst_26 {dimension_numbers = #tpu.dot_dimension_numbers<[1], [0], [0], [1], [0, 0, 1, 1], [], []>} : vector<16x32xf32>, vector<32x64xf32>, vector<16x64xf32> -> vector<16x64xf32>
    %c0_27 = arith.constant 0 : index
    %c0_28 = arith.constant 0 : index
    %39 = vector.load %arg11[%c0_27, %c0_28] : memref<1x64xf32, #tpu.memory_space<vmem>>, vector<1x64xf32>
    %40 = vector.broadcast %39 : vector<1x64xf32> to vector<16x64xf32>
    %41 = arith.addf %38, %40 : vector<16x64xf32>
    %cst_29 = arith.constant 0.000000e+00 : f32
    %42 = vector.broadcast %cst_29 : f32 to vector<16x64xf32>
    %43 = arith.maximumf %41, %42 : vector<16x64xf32>
    %c0_30 = arith.constant 0 : index
    %c0_31 = arith.constant 0 : index
    %44 = vector.load %arg12[%c0_30, %c0_31] : memref<64x128xf32, #tpu.memory_space<vmem>>, vector<64x128xf32>
    %cst_32 = arith.constant dense<0.000000e+00> : vector<16x128xf32>
    %45 = tpu.matmul %43, %44, %cst_32 {dimension_numbers = #tpu.dot_dimension_numbers<[1], [0], [0], [1], [0, 0, 1, 1], [], []>} : vector<16x64xf32>, vector<64x128xf32>, vector<16x128xf32> -> vector<16x128xf32>
    %c0_33 = arith.constant 0 : index
    %c0_34 = arith.constant 0 : index
    %46 = vector.load %arg13[%c0_33, %c0_34] : memref<1x128xf32, #tpu.memory_space<vmem>>, vector<1x128xf32>
    %47 = vector.broadcast %46 : vector<1x128xf32> to vector<16x128xf32>
    %48 = arith.addf %45, %47 : vector<16x128xf32>
    %c0_35 = arith.constant 0 : index
    %c0_36 = arith.constant 0 : index
    %49 = vector.load %arg14[%c0_35, %c0_36] : memref<16x128xf32, #tpu.memory_space<vmem>>, vector<16x128xf32>
    tpu.vector_store %arg14[%c0_35, %c0_36], %48 {strides = array<i32>} : memref<16x128xf32, #tpu.memory_space<vmem>>, vector<16x128xf32>,
    return
  }
  func.func @transform_0(%arg0: i32) -> (i32, i32) {
    %c0_i32 = arith.constant 0 : i32
    %c0_i32_0 = arith.constant 0 : i32
    return %arg0, %c0_i32 : i32, i32
  }
  func.func @transform_1(%arg0: i32) -> (i32, i32) {
    %c0_i32 = arith.constant 0 : i32
    %c0_i32_0 = arith.constant 0 : i32
    return %arg0, %c0_i32 : i32, i32
  }
  func.func @transform_2(%arg0: i32) -> (i32, i32) {
    %c0_i32 = arith.constant 0 : i32
    %c0_i32_0 = arith.constant 0 : i32
    return %arg0, %c0_i32 : i32, i32
  }
  func.func @transform_3(%arg0: i32) -> (i32, i32) {
    %c0_i32 = arith.constant 0 : i32
    %c0_i32_0 = arith.constant 0 : i32
    %c0_i32_1 = arith.constant 0 : i32
    return %c0_i32, %c0_i32_0 : i32, i32
  }
  func.func @transform_4(%arg0: i32) -> (i32, i32) {
    %c0_i32 = arith.constant 0 : i32
    %c0_i32_0 = arith.constant 0 : i32
    %c0_i32_1 = arith.constant 0 : i32
    return %c0_i32, %c0_i32_0 : i32, i32
  }
  func.func @transform_5(%arg0: i32) -> (i32, i32) {
    %c0_i32 = arith.constant 0 : i32
    %c0_i32_0 = arith.constant 0 : i32
    %c0_i32_1 = arith.constant 0 : i32
    return %c0_i32, %c0_i32_0 : i32, i32
  }
  func.func @transform_6(%arg0: i32) -> (i32, i32) {
    %c0_i32 = arith.constant 0 : i32
    %c0_i32_0 = arith.constant 0 : i32
    %c0_i32_1 = arith.constant 0 : i32
    return %c0_i32, %c0_i32_0 : i32, i32
  }
  func.func @transform_7(%arg0: i32) -> (i32, i32) {
    %c0_i32 = arith.constant 0 : i32
    %c0_i32_0 = arith.constant 0 : i32
    %c0_i32_1 = arith.constant 0 : i32
    return %c0_i32, %c0_i32_0 : i32, i32
  }
  func.func @transform_8(%arg0: i32) -> (i32, i32) {
    %c0_i32 = arith.constant 0 : i32
    %c0_i32_0 = arith.constant 0 : i32
    %c0_i32_1 = arith.constant 0 : i32
    return %c0_i32, %c0_i32_0 : i32, i32
  }
  func.func @transform_9(%arg0: i32) -> (i32, i32) {
    %c0_i32 = arith.constant 0 : i32
    %c0_i32_0 = arith.constant 0 : i32
    %c0_i32_1 = arith.constant 0 : i32
    return %c0_i32, %c0_i32_0 : i32, i32
  }
  func.func @transform_10(%arg0: i32) -> (i32, i32) {
    %c0_i32 = arith.constant 0 : i32
    %c0_i32_0 = arith.constant 0 : i32
    %c0_i32_1 = arith.constant 0 : i32
    return %c0_i32, %c0_i32_0 : i32, i32
  }
  func.func @transform_11(%arg0: i32) -> (i32, i32) {
    %c0_i32 = arith.constant 0 : i32
    %c0_i32_0 = arith.constant 0 : i32
    %c0_i32_1 = arith.constant 0 : i32
    return %c0_i32, %c0_i32_0 : i32, i32
  }
  func.func @transform_12(%arg0: i32) -> (i32, i32) {
    %c0_i32 = arith.constant 0 : i32
    %c0_i32_0 = arith.constant 0 : i32
    %c0_i32_1 = arith.constant 0 : i32
    return %c0_i32, %c0_i32_0 : i32, i32
  }
  func.func @transform_13(%arg0: i32) -> (i32, i32) {
    %c0_i32 = arith.constant 0 : i32
    %c0_i32_0 = arith.constant 0 : i32
    return %arg0, %c0_i32 : i32, i32
  }
}

</mosaic_0001>

<llo_original>
// kernel: tpu_custom_call.1
$region0: #{tpu_custom_call.1}
  #allocation0 [shape = 'u32[]', space=smem, size = 0x4, offset = 0x4, fixed_abs, tag = 'smem constant byte address 0x4 - core index']
  #allocation1 [shape = 'u32[72,128]{1,0:T(1,128)}', space=vmem, size = 0x9000, scoped, tag = 'internal scratch']
  %s0 = inlined_call_operand.hbm [shape: f32[16,24], index: 0, kind: input, shape index: {}]
  %s1 = inlined_call_operand.hbm [shape: f32[16,10], index: 1, kind: input, shape index: {}]
  %s2 = inlined_call_operand.vmem [shape: f32[16,6], index: 2, kind: input, shape index: {}]
  %s3 = inlined_call_operand.hbm [shape: f32[24,32], index: 3, kind: input, shape index: {}]
  %s4 = inlined_call_operand.hbm [shape: f32[10,32], index: 4, kind: input, shape index: {}]
  %s5 = inlined_call_operand.hbm [shape: f32[6,32], index: 5, kind: input, shape index: {}]
  %s6 = inlined_call_operand.hbm [shape: f32[1,32], index: 6, kind: input, shape index: {}]
  %s7 = inlined_call_operand.hbm [shape: f32[1,32], index: 7, kind: input, shape index: {}]
  %s8 = inlined_call_operand.hbm [shape: f32[1,32], index: 8, kind: input, shape index: {}]
  %s9 = inlined_call_operand.vmem [shape: f32[32,64], index: 9, kind: input, shape index: {}]
  %s10 = inlined_call_operand.vmem [shape: f32[1,64], index: 10, kind: input, shape index: {}]
  %s11 = inlined_call_operand.hbm [shape: f32[64,128], index: 11, kind: input, shape index: {}]
  %s12 = inlined_call_operand.vmem [shape: f32[1,128], index: 12, kind: input, shape index: {}]
  %s13 = inlined_call_operand.hbm [shape: f32[16,128], index: 13, kind: output, shape index: {}]
  %s14 = sld [smem:[#allocation0]]
  $region98: #{tpu_custom_call.1} parent=0
    _
  %s16 = ssub.s32 1, %s14
  %s17 = scalar_select 0, %s16, %s14
  $region1: #{tpu_custom_call.1} parent=0
    #allocation2 [shape = 'u8[8192]{0}', space=vmem, size = 0x2000, scoped, tag = 'input window, operand 0, single buffered']
    #allocation3 [shape = 's32[1]{0}', space=sflag, size = 0x4, scoped, tag = 'scoped memory for tpu_custom_call.1']
    #allocation4 [shape = 's32[1]{0}', space=sflag, size = 0x4, scoped, tag = 'scoped memory for tpu_custom_call.1']
    #allocation5 [shape = 'u8[8192]{0}', space=vmem, size = 0x2000, scoped, tag = 'input window, operand 1, single buffered']
    #allocation6 [shape = 's32[1]{0}', space=sflag, size = 0x4, scoped, tag = 'scoped memory for tpu_custom_call.1']
    #allocation7 [shape = 'u8[12288]{0}', space=vmem, size = 0x3000, scoped, tag = 'input window, operand 3, single buffered']
    #allocation8 [shape = 'u8[8192]{0}', space=vmem, size = 0x2000, scoped, tag = 'input window, operand 4, single buffered']
    #allocation9 [shape = 's32[1]{0}', space=sflag, size = 0x4, scoped, tag = 'scoped memory for tpu_custom_call.1']
    #allocation10 [shape = 'u8[4096]{0}', space=vmem, size = 0x1000, scoped, tag = 'input window, operand 5, single buffered']
    #allocation11 [shape = 'u8[512]{0}', space=vmem, size = 0x400, scoped, tag = 'input window, operand 6, single buffered']
    #allocation12 [shape = 's32[1]{0}', space=sflag, size = 0x4, scoped, tag = 'scoped memory for tpu_custom_call.1']
    #allocation13 [shape = 'u8[512]{0}', space=vmem, size = 0x400, scoped, tag = 'input window, operand 7, single buffered']
    #allocation14 [shape = 'u8[512]{0}', space=vmem, size = 0x400, scoped, tag = 'input window, operand 8, single buffered']
    #allocation15 [shape = 's32[1]{0}', space=sflag, size = 0x4, scoped, tag = 'scoped memory for tpu_custom_call.1']
    #allocation16 [shape = 'u8[32768]{0}', space=vmem, size = 0x8000, scoped, tag = 'input window, operand 11, single buffered']
    #allocation17 [shape = 'u8[8192]{0}', space=vmem, size = 0x2000, scoped, tag = 'output window, operand 0, single buffered']
    %18 = vsyncpa [#allocation3], 0
    %19 = vsyncpa [#allocation6], 0
    %20 = vsyncpa [#allocation9], 0
    %21 = vsyncpa [#allocation12], 0
    %22 = vsyncpa [#allocation15], 0
    %23 = vsyncpa [#allocation4], 0
    // Predicated region
    $region2: #{tpu_custom_call.1} parent=1 // pred_check
      _
    $region3: #{tpu_custom_call.1} parent=1 // pred_check_branch
      %25 = sbr.rel (0) target = $region5
    $region4: #{tpu_custom_call.1} parent=1 // pred_region
      %27 = vsyncadd [#allocation3], 0
      %s28 = sshll.u32 %s0, 4
      %s29 = int_to_ptr.hbm [resolvable:$true] %s28
      %s30 = sshll.u32 [#allocation2], 4
      %s31 = int_to_ptr.vmem [resolvable:$true] %s30
      %36 = dma.hbm_to_vmem [thread:$0]  %s29, 256, %s31, [#allocation3], 128, 128, 8
    $region5: #{tpu_custom_call.1} parent=1 // pred_fallthru
      _
    // Predicated region
    $region6: #{tpu_custom_call.1} parent=1 // pred_check
      _
    $region7: #{tpu_custom_call.1} parent=1 // pred_check_branch
      %38 = sbr.rel (0) target = $region9
    $region8: #{tpu_custom_call.1} parent=1 // pred_region
      %40 = vsyncadd [#allocation6], 0
      %s41 = sshll.u32 %s1, 4
      %s42 = int_to_ptr.hbm [resolvable:$true] %s41
      %s43 = sshll.u32 [#allocation5], 4
      %s44 = int_to_ptr.vmem [resolvable:$true] %s43
      %49 = dma.hbm_to_vmem [thread:$0]  %s42, 256, %s44, [#allocation6], 128, 128, 8
    $region9: #{tpu_custom_call.1} parent=1 // pred_fallthru
      _
    // Predicated region
    $region10: #{tpu_custom_call.1} parent=1 // pred_check
      _
    $region11: #{tpu_custom_call.1} parent=1 // pred_check_branch
      %51 = sbr.rel (0) target = $region13
    $region12: #{tpu_custom_call.1} parent=1 // pred_region
      _
    $region13: #{tpu_custom_call.1} parent=1 // pred_fallthru
      _
    // Predicated region
    $region14: #{tpu_custom_call.1} parent=1 // pred_check
      _
    $region15: #{tpu_custom_call.1} parent=1 // pred_check_branch
      %53 = sbr.rel (0) target = $region17
    $region16: #{tpu_custom_call.1} parent=1 // pred_region
      %55 = vsyncadd [#allocation6], 0
      %s56 = sshll.u32 %s3, 4
      %s57 = int_to_ptr.hbm [resolvable:$true] %s56
      %s58 = sshll.u32 [#allocation7], 4
      %s59 = int_to_ptr.vmem [resolvable:$true] %s58
      %64 = dma.hbm_to_vmem [thread:$0]  %s57, 384, %s59, [#allocation6], 128, 128, 8
    $region17: #{tpu_custom_call.1} parent=1 // pred_fallthru
      _
    // Predicated region
    $region18: #{tpu_custom_call.1} parent=1 // pred_check
      _
    $region19: #{tpu_custom_call.1} parent=1 // pred_check_branch
      %66 = sbr.rel (0) target = $region21
    $region20: #{tpu_custom_call.1} parent=1 // pred_region
      %68 = vsyncadd [#allocation9], 0
      %s69 = sshll.u32 %s4, 4
      %s70 = int_to_ptr.hbm [resolvable:$true] %s69
      %s71 = sshll.u32 [#allocation8], 4
      %s72 = int_to_ptr.vmem [resolvable:$true] %s71
      %77 = dma.hbm_to_vmem [thread:$0]  %s70, 256, %s72, [#allocation9], 128, 128, 8
    $region21: #{tpu_custom_call.1} parent=1 // pred_fallthru
      _
    // Predicated region
    $region22: #{tpu_custom_call.1} parent=1 // pred_check
      _
    $region23: #{tpu_custom_call.1} parent=1 // pred_check_branch
      %79 = sbr.rel (0) target = $region25
    $region24: #{tpu_custom_call.1} parent=1 // pred_region
      %81 = vsyncadd [#allocation9], 0
      %s83 = sshll.u32 %s5, 4
      %s84 = int_to_ptr.hbm [resolvable:$true] %s83
      %s85 = sshll.u32 [#allocation10], 4
      %s86 = int_to_ptr.vmem [resolvable:$true] %s85
      %88 = dma.hbm_to_vmem [thread:$0]  %s84, 128, %s86, [#allocation9]
    $region25: #{tpu_custom_call.1} parent=1 // pred_fallthru
      _
    // Predicated region
    $region26: #{tpu_custom_call.1} parent=1 // pred_check
      _
    $region27: #{tpu_custom_call.1} parent=1 // pred_check_branch
      %90 = sbr.rel (0) target = $region29
    $region28: #{tpu_custom_call.1} parent=1 // pred_region
      %92 = vsyncadd [#allocation12], 0
      %s94 = sshll.u32 %s6, 4
      %s95 = int_to_ptr.hbm [resolvable:$true] %s94
      %s96 = sshll.u32 [#allocation11], 4
      %s97 = int_to_ptr.vmem [resolvable:$true] %s96
      %99 = dma.hbm_to_vmem [thread:$0]  %s95, 16, %s97, [#allocation12]
    $region29: #{tpu_custom_call.1} parent=1 // pred_fallthru
      _
    // Predicated region
    $region30: #{tpu_custom_call.1} parent=1 // pred_check
      _
    $region31: #{tpu_custom_call.1} parent=1 // pred_check_branch
      %101 = sbr.rel (0) target = $region33
    $region32: #{tpu_custom_call.1} parent=1 // pred_region
      %103 = vsyncadd [#allocation12], 0
      %s105 = sshll.u32 %s7, 4
      %s106 = int_to_ptr.hbm [resolvable:$true] %s105
      %s107 = sshll.u32 [#allocation13], 4
      %s108 = int_to_ptr.vmem [resolvable:$true] %s107
      %110 = dma.hbm_to_vmem [thread:$0]  %s106, 16, %s108, [#allocation12]
    $region33: #{tpu_custom_call.1} parent=1 // pred_fallthru
      _
    // Predicated region
    $region34: #{tpu_custom_call.1} parent=1 // pred_check
      _
    $region35: #{tpu_custom_call.1} parent=1 // pred_check_branch
      %112 = sbr.rel (0) target = $region37
    $region36: #{tpu_custom_call.1} parent=1 // pred_region
      %114 = vsyncadd [#allocation15], 0
      %s116 = sshll.u32 %s8, 4
      %s117 = int_to_ptr.hbm [resolvable:$true] %s116
      %s118 = sshll.u32 [#allocation14], 4
      %s119 = int_to_ptr.vmem [resolvable:$true] %s118
      %121 = dma.hbm_to_vmem [thread:$0]  %s117, 16, %s119, [#allocation15]
    $region37: #{tpu_custom_call.1} parent=1 // pred_fallthru
      _
    // Predicated region
    $region38: #{tpu_custom_call.1} parent=1 // pred_check
      _
    $region39: #{tpu_custom_call.1} parent=1 // pred_check_branch
      %123 = sbr.rel (0) target = $region41
    $region40: #{tpu_custom_call.1} parent=1 // pred_region
      _
    $region41: #{tpu_custom_call.1} parent=1 // pred_fallthru
      _
    // Predicated region
    $region42: #{tpu_custom_call.1} parent=1 // pred_check
      _
    $region43: #{tpu_custom_call.1} parent=1 // pred_check_branch
      %125 = sbr.rel (0) target = $region45
    $region44: #{tpu_custom_call.1} parent=1 // pred_region
      _
    $region45: #{tpu_custom_call.1} parent=1 // pred_fallthru
      _
    // Predicated region
    $region46: #{tpu_custom_call.1} parent=1 // pred_check
      _
    $region47: #{tpu_custom_call.1} parent=1 // pred_check_branch
      %127 = sbr.rel (0) target = $region49
    $region48: #{tpu_custom_call.1} parent=1 // pred_region
      %129 = vsyncadd [#allocation15], 0
      %s130 = sshll.u32 %s11, 4
      %s131 = int_to_ptr.hbm [resolvable:$true] %s130
      %s132 = sshll.u32 [#allocation16], 4
      %s133 = int_to_ptr.vmem [resolvable:$true] %s132
      %138 = dma.hbm_to_vmem [thread:$0]  %s131, 1024, %s133, [#allocation15], 128, 128, 8
    $region49: #{tpu_custom_call.1} parent=1 // pred_fallthru
      _
    // Predicated region
    $region50: #{tpu_custom_call.1} parent=1 // pred_check
      _
    $region51: #{tpu_custom_call.1} parent=1 // pred_check_branch
      %140 = sbr.rel (0) target = $region53
    $region52: #{tpu_custom_call.1} parent=1 // pred_region
      _
    $region53: #{tpu_custom_call.1} parent=1 // pred_fallthru
      _
    // Predicated region
    $region54: #{tpu_custom_call.1} parent=1 // pred_check
      _
    $region55: #{tpu_custom_call.1} parent=1 // pred_check_branch
      %142 = sbr.rel (0) target = $region57
    $region56: #{tpu_custom_call.1} parent=1 // pred_region
      %144 = dma.done [#allocation3], 256
    $region57: #{tpu_custom_call.1} parent=1 // pred_fallthru
      _
    // Predicated region
    $region58: #{tpu_custom_call.1} parent=1 // pred_check
      _
    $region59: #{tpu_custom_call.1} parent=1 // pred_check_branch
      %146 = sbr.rel (0) target = $region61
    $region60: #{tpu_custom_call.1} parent=1 // pred_region
      %148 = dma.done [#allocation6], 256
    $region61: #{tpu_custom_call.1} parent=1 // pred_fallthru
      _
    // Predicated region
    $region62: #{tpu_custom_call.1} parent=1 // pred_check
      _
    $region63: #{tpu_custom_call.1} parent=1 // pred_check_branch
      %150 = sbr.rel (0) target = $region65
    $region64: #{tpu_custom_call.1} parent=1 // pred_region
      %152 = dma.done [#allocation6], 384
    $region65: #{tpu_custom_call.1} parent=1 // pred_fallthru
      _
    // Predicated region
    $region66: #{tpu_custom_call.1} parent=1 // pred_check
      _
    $region67: #{tpu_custom_call.1} parent=1 // pred_check_branch
      %154 = sbr.rel (0) target = $region69
    $region68: #{tpu_custom_call.1} parent=1 // pred_region
      %156 = dma.done [#allocation9], 256
    $region69: #{tpu_custom_call.1} parent=1 // pred_fallthru
      _
    // Predicated region
    $region70: #{tpu_custom_call.1} parent=1 // pred_check
      _
    $region71: #{tpu_custom_call.1} parent=1 // pred_check_branch
      %158 = sbr.rel (0) target = $region73
    $region72: #{tpu_custom_call.1} parent=1 // pred_region
      %160 = dma.done [#allocation9], 128
    $region73: #{tpu_custom_call.1} parent=1 // pred_fallthru
      _
    // Predicated region
    $region74: #{tpu_custom_call.1} parent=1 // pred_check
      _
    $region75: #{tpu_custom_call.1} parent=1 // pred_check_branch
      %162 = sbr.rel (0) target = $region77
    $region76: #{tpu_custom_call.1} parent=1 // pred_region
      %164 = dma.done [#allocation12], 16
    $region77: #{tpu_custom_call.1} parent=1 // pred_fallthru
      _
    // Predicated region
    $region78: #{tpu_custom_call.1} parent=1 // pred_check
      _
    $region79: #{tpu_custom_call.1} parent=1 // pred_check_branch
      %166 = sbr.rel (0) target = $region81
    $region80: #{tpu_custom_call.1} parent=1 // pred_region
      %168 = dma.done [#allocation12], 16
    $region81: #{tpu_custom_call.1} parent=1 // pred_fallthru
      _
    // Predicated region
    $region82: #{tpu_custom_call.1} parent=1 // pred_check
      _
    $region83: #{tpu_custom_call.1} parent=1 // pred_check_branch
      %170 = sbr.rel (0) target = $region85
    $region84: #{tpu_custom_call.1} parent=1 // pred_region
      %172 = dma.done [#allocation15], 16
    $region85: #{tpu_custom_call.1} parent=1 // pred_fallthru
      _
    // Predicated region
    $region86: #{tpu_custom_call.1} parent=1 // pred_check
      _
    $region87: #{tpu_custom_call.1} parent=1 // pred_check_branch
      %174 = sbr.rel (0) target = $region89
    $region88: #{tpu_custom_call.1} parent=1 // pred_region
      %176 = dma.done [#allocation15], 1024
    $region89: #{tpu_custom_call.1} parent=1 // pred_fallthru
      _
    %v177 = vld [vmem:[#allocation2] sm:$0xff]
    %v178 = vld [vmem:[#allocation2 + $0x8] sm:$0xff]
    %v179 = vld [vmem:[#allocation7] sm:$0xff]
    %v180 = vld [vmem:[#allocation7 + $0x8] sm:$0xff]
    %v181 = vld [vmem:[#allocation7 + $0x10] sm:$0xff]
    %v182 = vld [vmem:[#allocation5] sm:$0xff]
    %v183 = vld [vmem:[#allocation5 + $0x8] sm:$0xff]
    %v184 = vld [vmem:[#allocation8] sm:$0xff]
    %v185 = vld [vmem:[#allocation8 + $0x8] sm:$0x3]
    %vm186 = vcmask 80896
    %v188 = vsel %vm186, %v182, 0
    %v191 = vsel %vm186, %v183, 0
    %vm193 = vcmask 1041408
    %v195 = vsel %vm193, %v185, 0
    %197 = vmatpush.msra.mxu0 0.0
    %198 = vmatpush.msra.mxu0 0.0
    %199 = vmatpush.msra.mxu0 0.0
    %200 = vmatpush.msra.mxu0 0.0
    %201 = vmatpush.msra.mxu0 0.0
    %202 = vmatpush.msra.mxu0 0.0
    %203 = vmatpush.msra.mxu0 0.0
    %204 = vmatpush.msra.mxu0 0.0
    %205 = vmatpush.msra.mxu0 0.0
    %206 = vmatpush.msra.mxu0 0.0
    %207 = vmatpush.msra.mxu0 0.0
    %208 = vmatpush.msra.mxu0 0.0
    %209 = vmatpush.msra.mxu0 0.0
    %210 = vmatpush.msra.mxu0 0.0
    %211 = vmatpush.msra.mxu0 %v195
    %212 = vmatpush.msra.mxu0 %v184
    %213 = vmatmul.f32.gmra.mxu0 %v188
    %v214 = vpop.f32.mrf.mxu0
    %v215 = vadd.f32 0.0, %v214
    %216 = vmatmul.f32.gmra.mxu0 %v191
    %v217 = vpop.f32.mrf.mxu0
    %v218 = vadd.f32 0.0, %v217
    %219 = vdwg.mxu0
    %vm220 = vcmask 195584
    %v222 = vsel %vm220, %v177, 0
    %v225 = vsel %vm220, %v178, 0
    %227 = vmatpush.msra.mxu0 0.0
    %228 = vmatpush.msra.mxu0 0.0
    %229 = vmatpush.msra.mxu0 0.0
    %230 = vmatpush.msra.mxu0 0.0
    %231 = vmatpush.msra.mxu0 0.0
    %232 = vmatpush.msra.mxu0 0.0
    %233 = vmatpush.msra.mxu0 0.0
    %234 = vmatpush.msra.mxu0 0.0
    %235 = vmatpush.msra.mxu0 0.0
    %236 = vmatpush.msra.mxu0 0.0
    %237 = vmatpush.msra.mxu0 0.0
    %238 = vmatpush.msra.mxu0 0.0
    %239 = vmatpush.msra.mxu0 0.0
    %240 = vmatpush.msra.mxu0 %v181
    %241 = vmatpush.msra.mxu0 %v180
    %242 = vmatpush.msra.mxu0 %v179
    %243 = vmatmul.f32.gmra.mxu0 %v222
    %v244 = vpop.f32.mrf.mxu0
    %v245 = vadd.f32 %v215, %v244
    %246 = vmatmul.f32.gmra.mxu0 %v225
    %v247 = vpop.f32.mrf.mxu0
    %v248 = vadd.f32 %v218, %v247
    %249 = vdwg.mxu0
    %v250 = vld [vmem:[%s2] sm:$0xff]
    %v251 = vld [vmem:[%s2 + $0x8] sm:$0xff]
    %v252 = vld [vmem:[#allocation10] sm:$0x3f]
    %vm253 = vcmask 48128
    %v255 = vsel %vm253, %v250, 0
    %v258 = vsel %vm253, %v251, 0
    %vm260 = vcmask 1045504
    %v262 = vsel %vm260, %v252, 0
    %264 = vmatpush.msra.mxu0 0.0
    %265 = vmatpush.msra.mxu0 0.0
    %266 = vmatpush.msra.mxu0 0.0
    %267 = vmatpush.msra.mxu0 0.0
    %268 = vmatpush.msra.mxu0 0.0
    %269 = vmatpush.msra.mxu0 0.0
    %270 = vmatpush.msra.mxu0 0.0
    %271 = vmatpush.msra.mxu0 0.0
    %272 = vmatpush.msra.mxu0 0.0
    %273 = vmatpush.msra.mxu0 0.0
    %274 = vmatpush.msra.mxu0 0.0
    %275 = vmatpush.msra.mxu0 0.0
    %276 = vmatpush.msra.mxu0 0.0
    %277 = vmatpush.msra.mxu0 0.0
    %278 = vmatpush.msra.mxu0 0.0
    %279 = vmatpush.msra.mxu0 %v262
    %280 = vmatmul.f32.gmra.mxu0 %v255
    %v281 = vpop.f32.mrf.mxu0
    %v282 = vadd.f32 0.0, %v281
    %283 = vmatmul.f32.gmra.mxu0 %v258
    %v284 = vpop.f32.mrf.mxu0
    %v285 = vadd.f32 0.0, %v284
    %286 = vdwg.mxu0
    %v287 = vadd.f32 %v245, %v282
    %v288 = vadd.f32 %v248, %v285
    %v289 = vld [vmem:[#allocation11] sm:$0x1]
    %v291 = vperm.slane %v289, 0
    %v293 = vadd.f32 %v287, %v291
    %v294 = vadd.f32 %v288, %v291
    %vm295 = vcmask 261120
    %v296 = vsel %vm295, %v293, 0.0
    %297 = vadd.xlane.f32.xlu0 %v296
    %v298 = vpop.xlane.xlu0 %297
    %v299 = vsel %vm295, %v294, 0.0
    %300 = vadd.xlane.f32.xlu0 %v299
    %v301 = vpop.xlane.xlu0 %300
    %v302 = vrcp.pop 32.0
    %v303 = vmul.f32 32.0, %v302
    %v304 = vsub.f32 1.0, %v303
    %v305 = vmul.f32 %v302, %v304
    %v306 = vadd.f32 %v302, %v305
    %vm307 = vweird.f32 %v302
    %v308 = vsel %vm307, %v302, %v306
    %v309 = vmul.f32 %v298, %v308
    %v310 = vmul.f32 %v301, %v308
    %v311 = vsub.f32 %v293, %v309
    %v312 = vsub.f32 %v294, %v310
    %v313 = vmul.f32 %v311, %v311
    %v314 = vmul.f32 %v312, %v312
    %v315 = vsel %vm295, %v313, 0.0
    %316 = vadd.xlane.f32.xlu0 %v315
    %v317 = vpop.xlane.xlu0 %316
    %v318 = vsel %vm295, %v314, 0.0
    %319 = vadd.xlane.f32.xlu0 %v318
    %v320 = vpop.xlane.xlu0 %319
    %v321 = vmul.f32 %v317, %v308
    %v322 = vmul.f32 %v320, %v308
    %v323 = vadd.f32 %v321, 1e-05
    %v324 = vadd.f32 %v322, 1e-05
    %v325 = vrsqrt.pop %v323
    %v326 = vmul.f32 %v325, %v323
    %v327 = vmul.f32 %v326, %v325
    %v328 = vmul.f32 0.5, %v327
    %v329 = vsub.f32 1.5, %v328
    %v330 = vmul.f32 %v325, %v329
    %vm331 = vweird.f32 %v323
    %vm332 = vweird.f32 %v325
    %vm333 = vmor %vm331, %vm332
    %v334 = vsel %vm333, %v325, %v330
    %v335 = vrsqrt.pop %v324
    %v336 = vmul.f32 %v335, %v324
    %v337 = vmul.f32 %v336, %v335
    %v338 = vmul.f32 0.5, %v337
    %v339 = vsub.f32 1.5, %v338
    %v340 = vmul.f32 %v335, %v339
    %vm341 = vweird.f32 %v324
    %vm342 = vweird.f32 %v335
    %vm343 = vmor %vm341, %vm342
    %v344 = vsel %vm343, %v335, %v340
    %v345 = vmul.f32 %v311, %v334
    %v346 = vmul.f32 %v312, %v344
    %v347 = vld [vmem:[#allocation13] sm:$0x1]
    %v349 = vperm.slane %v347, 0
    %v351 = vmul.f32 %v345, %v349
    %v352 = vmul.f32 %v346, %v349
    %v353 = vld [vmem:[#allocation14] sm:$0x1]
    %v355 = vperm.slane %v353, 0
    %v357 = vadd.f32 %v351, %v355
    %v358 = vadd.f32 %v352, %v355
    %v359 = vtanh.pop %v357
    %v360 = vtanh.pop %v358
    %v361 = vld [vmem:[%s9] sm:$0xff]
    %v362 = vld [vmem:[%s9 + $0x8] sm:$0xff]
    %v363 = vld [vmem:[%s9 + $0x10] sm:$0xff]
    %v364 = vld [vmem:[%s9 + $0x18] sm:$0xff]
    %v365 = vld [vmem:[%s10] sm:$0x1]
    %v367 = vperm.slane %v365, 0
    %v370 = vsel %vm295, %v359, 0
    %v373 = vsel %vm295, %v360, 0
    %375 = vmatpush.msra.mxu0 0.0
    %376 = vmatpush.msra.mxu0 0.0
    %377 = vmatpush.msra.mxu0 0.0
    %378 = vmatpush.msra.mxu0 0.0
    %379 = vmatpush.msra.mxu0 0.0
    %380 = vmatpush.msra.mxu0 0.0
    %381 = vmatpush.msra.mxu0 0.0
    %382 = vmatpush.msra.mxu0 0.0
    %383 = vmatpush.msra.mxu0 0.0
    %384 = vmatpush.msra.mxu0 0.0
    %385 = vmatpush.msra.mxu0 0.0
    %386 = vmatpush.msra.mxu0 0.0
    %387 = vmatpush.msra.mxu0 %v364
    %388 = vmatpush.msra.mxu0 %v363
    %389 = vmatpush.msra.mxu0 %v362
    %390 = vmatpush.msra.mxu0 %v361
    %391 = vmatmul.f32.gmra.mxu0 %v370
    %v392 = vpop.f32.mrf.mxu0
    %v393 = vadd.f32 %v367, %v392
    %394 = vmatmul.f32.gmra.mxu0 %v373
    %v395 = vpop.f32.mrf.mxu0
    %v396 = vadd.f32 %v367, %v395
    %397 = vdwg.mxu0
    %v398 = vmax.f32 %v393, 0.0
    %v399 = vmax.f32 %v396, 0.0
    %v400 = vld [vmem:[#allocation16] sm:$0xff]
    %v401 = vld [vmem:[#allocation16 + $0x8] sm:$0xff]
    %v402 = vld [vmem:[#allocation16 + $0x10] sm:$0xff]
    %v403 = vld [vmem:[#allocation16 + $0x18] sm:$0xff]
    %v404 = vld [vmem:[#allocation16 + $0x20] sm:$0xff]
    %v405 = vld [vmem:[#allocation16 + $0x28] sm:$0xff]
    %v406 = vld [vmem:[#allocation16 + $0x30] sm:$0xff]
    %v407 = vld [vmem:[#allocation16 + $0x38] sm:$0xff]
    %v408 = vld [vmem:[%s12] sm:$0x1]
    %v410 = vperm.slane %v408, 0
    %vm412 = vcmask 523264
    %v414 = vsel %vm412, %v398, 0
    %v417 = vsel %vm412, %v399, 0
    %419 = vmatpush.msra.mxu0 0.0
    %420 = vmatpush.msra.mxu0 0.0
    %421 = vmatpush.msra.mxu0 0.0
    %422 = vmatpush.msra.mxu0 0.0
    %423 = vmatpush.msra.mxu0 0.0
    %424 = vmatpush.msra.mxu0 0.0
    %425 = vmatpush.msra.mxu0 0.0
    %426 = vmatpush.msra.mxu0 0.0
    %427 = vmatpush.msra.mxu0 %v407
    %428 = vmatpush.msra.mxu0 %v406
    %429 = vmatpush.msra.mxu0 %v405
    %430 = vmatpush.msra.mxu0 %v404
    %431 = vmatpush.msra.mxu0 %v403
    %432 = vmatpush.msra.mxu0 %v402
    %433 = vmatpush.msra.mxu0 %v401
    %434 = vmatpush.msra.mxu0 %v400
    %435 = vmatmul.f32.gmra.mxu0 %v414
    %v436 = vpop.f32.mrf.mxu0
    %v437 = vadd.f32 %v410, %v436
    %438 = vmatmul.f32.gmra.mxu0 %v417
    %v439 = vpop.f32.mrf.mxu0
    %v440 = vadd.f32 %v410, %v439
    %441 = vdwg.mxu0
    %442 = vst [vmem:[#allocation17] sm:$0xff] %v437
    %443 = vst [vmem:[#allocation17 + $0x8] sm:$0xff] %v440
    // Predicated region
    $region90: #{tpu_custom_call.1} parent=1 // pred_check
      _
    $region91: #{tpu_custom_call.1} parent=1 // pred_check_branch
      %445 = sbr.rel (0) target = $region93
    $region92: #{tpu_custom_call.1} parent=1 // pred_region
      %447 = vsyncadd [#allocation4], 0
      %s448 = sshll.u32 [#allocation17], 4
      %s449 = int_to_ptr.vmem [resolvable:$true] %s448
      %s450 = sshll.u32 %s13, 4
      %s451 = int_to_ptr.hbm [resolvable:$true] %s450
      %456 = dma.vmem_to_hbm [thread:$0]  %s449, 256, %s451, [#allocation4], 128, 128, 8
    $region93: #{tpu_custom_call.1} parent=1 // pred_fallthru
      _
    // Predicated region
    $region94: #{tpu_custom_call.1} parent=1 // pred_check
      _
    $region95: #{tpu_custom_call.1} parent=1 // pred_check_branch
      %458 = sbr.rel (0) target = $region97
    $region96: #{tpu_custom_call.1} parent=1 // pred_region
      %460 = dma.done [#allocation4], 256
    $region97: #{tpu_custom_call.1} parent=1 // pred_fallthru
      _
    %461 = vsyncpa [#allocation3], 1
    %462 = vsyncpa [#allocation6], 1
    %463 = vsyncpa [#allocation9], 1
    %464 = vsyncpa [#allocation12], 1
    %465 = vsyncpa [#allocation15], 1
    %466 = vsyncpa [#allocation4], 1

// kernel: tpu_custom_call.1
$region0: #{tpu_custom_call.1}
  #allocation0 [shape = 'u32[]', space=smem, size = 0x4, offset = 0x4, fixed_abs, tag = 'smem constant byte address 0x4 - core index']
  #allocation1 [shape = 'u32[72,128]{1,0:T(1,128)}', space=vmem, size = 0x9000, scoped, tag = 'internal scratch']
  %s0 = inlined_call_operand.hbm [shape: f32[16,24], index: 0, kind: input, shape index: {}]
  %s1 = inlined_call_operand.hbm [shape: f32[16,10], index: 1, kind: input, shape index: {}]
  %s2 = inlined_call_operand.vmem [shape: f32[16,6], index: 2, kind: input, shape index: {}]
  %s3 = inlined_call_operand.hbm [shape: f32[24,32], index: 3, kind: input, shape index: {}]
  %s4 = inlined_call_operand.hbm [shape: f32[10,32], index: 4, kind: input, shape index: {}]
  %s5 = inlined_call_operand.hbm [shape: f32[6,32], index: 5, kind: input, shape index: {}]
  %s6 = inlined_call_operand.hbm [shape: f32[1,32], index: 6, kind: input, shape index: {}]
  %s7 = inlined_call_operand.hbm [shape: f32[1,32], index: 7, kind: input, shape index: {}]
  %s8 = inlined_call_operand.hbm [shape: f32[1,32], index: 8, kind: input, shape index: {}]
  %s9 = inlined_call_operand.vmem [shape: f32[32,64], index: 9, kind: input, shape index: {}]
  %s10 = inlined_call_operand.vmem [shape: f32[1,64], index: 10, kind: input, shape index: {}]
  %s11 = inlined_call_operand.hbm [shape: f32[64,128], index: 11, kind: input, shape index: {}]
  %s12 = inlined_call_operand.vmem [shape: f32[1,128], index: 12, kind: input, shape index: {}]
  %s13 = inlined_call_operand.hbm [shape: f32[16,128], index: 13, kind: output, shape index: {}]
  %s14 = sld [smem:[#allocation0]]
  $region98: #{tpu_custom_call.1} parent=0
    _
  %s16 = ssub.s32 1, %s14
  %s17 = scalar_select 0, %s16, %s14
  $region1: #{tpu_custom_call.1} parent=0
    #allocation2 [shape = 'u8[8192]{0}', space=vmem, size = 0x2000, scoped, tag = 'input window, operand 0, single buffered']
    #allocation3 [shape = 's32[1]{0}', space=sflag, size = 0x4, scoped, tag = 'scoped memory for tpu_custom_call.1']
    #allocation4 [shape = 's32[1]{0}', space=sflag, size = 0x4, scoped, tag = 'scoped memory for tpu_custom_call.1']
    #allocation5 [shape = 'u8[8192]{0}', space=vmem, size = 0x2000, scoped, tag = 'input window, operand 1, single buffered']
    #allocation6 [shape = 's32[1]{0}', space=sflag, size = 0x4, scoped, tag = 'scoped memory for tpu_custom_call.1']
    #allocation7 [shape = 'u8[12288]{0}', space=vmem, size = 0x3000, scoped, tag = 'input window, operand 3, single buffered']
    #allocation8 [shape = 'u8[8192]{0}', space=vmem, size = 0x2000, scoped, tag = 'input window, operand 4, single buffered']
    #allocation9 [shape = 's32[1]{0}', space=sflag, size = 0x4, scoped, tag = 'scoped memory for tpu_custom_call.1']
    #allocation10 [shape = 'u8[4096]{0}', space=vmem, size = 0x1000, scoped, tag = 'input window, operand 5, single buffered']
    #allocation11 [shape = 'u8[512]{0}', space=vmem, size = 0x400, scoped, tag = 'input window, operand 6, single buffered']
    #allocation12 [shape = 's32[1]{0}', space=sflag, size = 0x4, scoped, tag = 'scoped memory for tpu_custom_call.1']
    #allocation13 [shape = 'u8[512]{0}', space=vmem, size = 0x400, scoped, tag = 'input window, operand 7, single buffered']
    #allocation14 [shape = 'u8[512]{0}', space=vmem, size = 0x400, scoped, tag = 'input window, operand 8, single buffered']
    #allocation15 [shape = 's32[1]{0}', space=sflag, size = 0x4, scoped, tag = 'scoped memory for tpu_custom_call.1']
    #allocation16 [shape = 'u8[32768]{0}', space=vmem, size = 0x8000, scoped, tag = 'input window, operand 11, single buffered']
    #allocation17 [shape = 'u8[8192]{0}', space=vmem, size = 0x2000, scoped, tag = 'output window, operand 0, single buffered']
    %18 = vsyncpa [#allocation3], 0
    %19 = vsyncpa [#allocation6], 0
    %20 = vsyncpa [#allocation9], 0
    %21 = vsyncpa [#allocation12], 0
    %22 = vsyncpa [#allocation15], 0
    %23 = vsyncpa [#allocation4], 0
    // Predicated region
    $region2: #{tpu_custom_call.1} parent=1 // pred_check
      _
    $region3: #{tpu_custom_call.1} parent=1 // pred_check_branch
      %25 = sbr.rel (0) target = $region5
    $region4: #{tpu_custom_call.1} parent=1 // pred_region
      %27 = vsyncadd [#allocation3], 0
      %s28 = sshll.u32 %s0, 4
      %s29 = int_to_ptr.hbm [resolvable:$true] %s28
      %s30 = sshll.u32 [#allocation2], 4
      %s31 = int_to_ptr.vmem [resolvable:$true] %s30
      %36 = dma.hbm_to_vmem [thread:$0]  %s29, 256, %s31, [#allocation3], 128, 128, 8
    $region5: #{tpu_custom_call.1} parent=1 // pred_fallthru
      _
    // Predicated region
    $region6: #{tpu_custom_call.1} parent=1 // pred_check
      _
    $region7: #{tpu_custom_call.1} parent=1 // pred_check_branch
      %38 = sbr.rel (0) target = $region9
    $region8: #{tpu_custom_call.1} parent=1 // pred_region
      %40 = vsyncadd [#allocation6], 0
      %s41 = sshll.u32 %s1, 4
      %s42 = int_to_ptr.hbm [resolvable:$true] %s41
      %s43 = sshll.u32 [#allocation5], 4
      %s44 = int_to_ptr.vmem [resolvable:$true] %s43
      %49 = dma.hbm_to_vmem [thread:$0]  %s42, 256, %s44, [#allocation6], 128, 128, 8
    $region9: #{tpu_custom_call.1} parent=1 // pred_fallthru
      _
    // Predicated region
    $region10: #{tpu_custom_call.1} parent=1 // pred_check
      _
    $region11: #{tpu_custom_call.1} parent=1 // pred_check_branch
      %51 = sbr.rel (0) target = $region13
    $region12: #{tpu_custom_call.1} parent=1 // pred_region
      _
    $region13: #{tpu_custom_call.1} parent=1 // pred_fallthru
      _
    // Predicated region
    $region14: #{tpu_custom_call.1} parent=1 // pred_check
      _
    $region15: #{tpu_custom_call.1} parent=1 // pred_check_branch
      %53 = sbr.rel (0) target = $region17
    $region16: #{tpu_custom_call.1} parent=1 // pred_region
      %55 = vsyncadd [#allocation6], 0
      %s56 = sshll.u32 %s3, 4
      %s57 = int_to_ptr.hbm [resolvable:$true] %s56
      %s58 = sshll.u32 [#allocation7], 4
      %s59 = int_to_ptr.vmem [resolvable:$true] %s58
      %64 = dma.hbm_to_vmem [thread:$0]  %s57, 384, %s59, [#allocation6], 128, 128, 8
    $region17: #{tpu_custom_call.1} parent=1 // pred_fallthru
      _
    // Predicated region
    $region18: #{tpu_custom_call.1} parent=1 // pred_check
      _
    $region19: #{tpu_custom_call.1} parent=1 // pred_check_branch
      %66 = sbr.rel (0) target = $region21
    $region20: #{tpu_custom_call.1} parent=1 // pred_region
      %68 = vsyncadd [#allocation9], 0
      %s69 = sshll.u32 %s4, 4
      %s70 = int_to_ptr.hbm [resolvable:$true] %s69
      %s71 = sshll.u32 [#allocation8], 4
      %s72 = int_to_ptr.vmem [resolvable:$true] %s71
      %77 = dma.hbm_to_vmem [thread:$0]  %s70, 256, %s72, [#allocation9], 128, 128, 8
    $region21: #{tpu_custom_call.1} parent=1 // pred_fallthru
      _
    // Predicated region
    $region22: #{tpu_custom_call.1} parent=1 // pred_check
      _
    $region23: #{tpu_custom_call.1} parent=1 // pred_check_branch
      %79 = sbr.rel (0) target = $region25
    $region24: #{tpu_custom_call.1} parent=1 // pred_region
      %81 = vsyncadd [#allocation9], 0
      %s83 = sshll.u32 %s5, 4
      %s84 = int_to_ptr.hbm [resolvable:$true] %s83
      %s85 = sshll.u32 [#allocation10], 4
      %s86 = int_to_ptr.vmem [resolvable:$true] %s85
      %88 = dma.hbm_to_vmem [thread:$0]  %s84, 128, %s86, [#allocation9]
    $region25: #{tpu_custom_call.1} parent=1 // pred_fallthru
      _
    // Predicated region
    $region26: #{tpu_custom_call.1} parent=1 // pred_check
      _
    $region27: #{tpu_custom_call.1} parent=1 // pred_check_branch
      %90 = sbr.rel (0) target = $region29
    $region28: #{tpu_custom_call.1} parent=1 // pred_region
      %92 = vsyncadd [#allocation12], 0
      %s94 = sshll.u32 %s6, 4
      %s95 = int_to_ptr.hbm [resolvable:$true] %s94
      %s96 = sshll.u32 [#allocation11], 4
      %s97 = int_to_ptr.vmem [resolvable:$true] %s96
      %99 = dma.hbm_to_vmem [thread:$0]  %s95, 16, %s97, [#allocation12]
    $region29: #{tpu_custom_call.1} parent=1 // pred_fallthru
      _
    // Predicated region
    $region30: #{tpu_custom_call.1} parent=1 // pred_check
      _
    $region31: #{tpu_custom_call.1} parent=1 // pred_check_branch
      %101 = sbr.rel (0) target = $region33
    $region32: #{tpu_custom_call.1} parent=1 // pred_region
      %103 = vsyncadd [#allocation12], 0
      %s105 = sshll.u32 %s7, 4
      %s106 = int_to_ptr.hbm [resolvable:$true] %s105
      %s107 = sshll.u32 [#allocation13], 4
      %s108 = int_to_ptr.vmem [resolvable:$true] %s107
      %110 = dma.hbm_to_vmem [thread:$0]  %s106, 16, %s108, [#allocation12]
    $region33: #{tpu_custom_call.1} parent=1 // pred_fallthru
      _
    // Predicated region
    $region34: #{tpu_custom_call.1} parent=1 // pred_check
      _
    $region35: #{tpu_custom_call.1} parent=1 // pred_check_branch
      %112 = sbr.rel (0) target = $region37
    $region36: #{tpu_custom_call.1} parent=1 // pred_region
      %114 = vsyncadd [#allocation15], 0
      %s116 = sshll.u32 %s8, 4
      %s117 = int_to_ptr.hbm [resolvable:$true] %s116
      %s118 = sshll.u32 [#allocation14], 4
      %s119 = int_to_ptr.vmem [resolvable:$true] %s118
      %121 = dma.hbm_to_vmem [thread:$0]  %s117, 16, %s119, [#allocation15]
    $region37: #{tpu_custom_call.1} parent=1 // pred_fallthru
      _
    // Predicated region
    $region38: #{tpu_custom_call.1} parent=1 // pred_check
      _
    $region39: #{tpu_custom_call.1} parent=1 // pred_check_branch
      %123 = sbr.rel (0) target = $region41
    $region40: #{tpu_custom_call.1} parent=1 // pred_region
      _
    $region41: #{tpu_custom_call.1} parent=1 // pred_fallthru
      _
    // Predicated region
    $region42: #{tpu_custom_call.1} parent=1 // pred_check
      _
    $region43: #{tpu_custom_call.1} parent=1 // pred_check_branch
      %125 = sbr.rel (0) target = $region45
    $region44: #{tpu_custom_call.1} parent=1 // pred_region
      _
    $region45: #{tpu_custom_call.1} parent=1 // pred_fallthru
      _
    // Predicated region
    $region46: #{tpu_custom_call.1} parent=1 // pred_check
      _
    $region47: #{tpu_custom_call.1} parent=1 // pred_check_branch
      %127 = sbr.rel (0) target = $region49
    $region48: #{tpu_custom_call.1} parent=1 // pred_region
      %129 = vsyncadd [#allocation15], 0
      %s130 = sshll.u32 %s11, 4
      %s131 = int_to_ptr.hbm [resolvable:$true] %s130
      %s132 = sshll.u32 [#allocation16], 4
      %s133 = int_to_ptr.vmem [resolvable:$true] %s132
      %138 = dma.hbm_to_vmem [thread:$0]  %s131, 1024, %s133, [#allocation15], 128, 128, 8
    $region49: #{tpu_custom_call.1} parent=1 // pred_fallthru
      _
    // Predicated region
    $region50: #{tpu_custom_call.1} parent=1 // pred_check
      _
    $region51: #{tpu_custom_call.1} parent=1 // pred_check_branch
      %140 = sbr.rel (0) target = $region53
    $region52: #{tpu_custom_call.1} parent=1 // pred_region
      _
    $region53: #{tpu_custom_call.1} parent=1 // pred_fallthru
      _
    // Predicated region
    $region54: #{tpu_custom_call.1} parent=1 // pred_check
      _
    $region55: #{tpu_custom_call.1} parent=1 // pred_check_branch
      %142 = sbr.rel (0) target = $region57
    $region56: #{tpu_custom_call.1} parent=1 // pred_region
      %144 = dma.done [#allocation3], 256
    $region57: #{tpu_custom_call.1} parent=1 // pred_fallthru
      _
    // Predicated region
    $region58: #{tpu_custom_call.1} parent=1 // pred_check
      _
    $region59: #{tpu_custom_call.1} parent=1 // pred_check_branch
      %146 = sbr.rel (0) target = $region61
    $region60: #{tpu_custom_call.1} parent=1 // pred_region
      %148 = dma.done [#allocation6], 256
    $region61: #{tpu_custom_call.1} parent=1 // pred_fallthru
      _
    // Predicated region
    $region62: #{tpu_custom_call.1} parent=1 // pred_check
      _
    $region63: #{tpu_custom_call.1} parent=1 // pred_check_branch
      %150 = sbr.rel (0) target = $region65
    $region64: #{tpu_custom_call.1} parent=1 // pred_region
      %152 = dma.done [#allocation6], 384
    $region65: #{tpu_custom_call.1} parent=1 // pred_fallthru
      _
    // Predicated region
    $region66: #{tpu_custom_call.1} parent=1 // pred_check
      _
    $region67: #{tpu_custom_call.1} parent=1 // pred_check_branch
      %154 = sbr.rel (0) target = $region69
    $region68: #{tpu_custom_call.1} parent=1 // pred_region
      %156 = dma.done [#allocation9], 256
    $region69: #{tpu_custom_call.1} parent=1 // pred_fallthru
      _
    // Predicated region
    $region70: #{tpu_custom_call.1} parent=1 // pred_check
      _
    $region71: #{tpu_custom_call.1} parent=1 // pred_check_branch
      %158 = sbr.rel (0) target = $region73
    $region72: #{tpu_custom_call.1} parent=1 // pred_region
      %160 = dma.done [#allocation9], 128
    $region73: #{tpu_custom_call.1} parent=1 // pred_fallthru
      _
    // Predicated region
    $region74: #{tpu_custom_call.1} parent=1 // pred_check
      _
    $region75: #{tpu_custom_call.1} parent=1 // pred_check_branch
      %162 = sbr.rel (0) target = $region77
    $region76: #{tpu_custom_call.1} parent=1 // pred_region
      %164 = dma.done [#allocation12], 16
    $region77: #{tpu_custom_call.1} parent=1 // pred_fallthru
      _
    // Predicated region
    $region78: #{tpu_custom_call.1} parent=1 // pred_check
      _
    $region79: #{tpu_custom_call.1} parent=1 // pred_check_branch
      %166 = sbr.rel (0) target = $region81
    $region80: #{tpu_custom_call.1} parent=1 // pred_region
      %168 = dma.done [#allocation12], 16
    $region81: #{tpu_custom_call.1} parent=1 // pred_fallthru
      _
    // Predicated region
    $region82: #{tpu_custom_call.1} parent=1 // pred_check
      _
    $region83: #{tpu_custom_call.1} parent=1 // pred_check_branch
      %170 = sbr.rel (0) target = $region85
    $region84: #{tpu_custom_call.1} parent=1 // pred_region
      %172 = dma.done [#allocation15], 16
    $region85: #{tpu_custom_call.1} parent=1 // pred_fallthru
      _
    // Predicated region
    $region86: #{tpu_custom_call.1} parent=1 // pred_check
      _
    $region87: #{tpu_custom_call.1} parent=1 // pred_check_branch
      %174 = sbr.rel (0) target = $region89
    $region88: #{tpu_custom_call.1} parent=1 // pred_region
      %176 = dma.done [#allocation15], 1024
    $region89: #{tpu_custom_call.1} parent=1 // pred_fallthru
      _
    %v177 = vld [vmem:[#allocation2] sm:$0xff]
    %v178 = vld [vmem:[#allocation2 + $0x8] sm:$0xff]
    %v179 = vld [vmem:[#allocation7] sm:$0xff]
    %v180 = vld [vmem:[#allocation7 + $0x8] sm:$0xff]
    %v181 = vld [vmem:[#allocation7 + $0x10] sm:$0xff]
    %v182 = vld [vmem:[#allocation5] sm:$0xff]
    %v183 = vld [vmem:[#allocation5 + $0x8] sm:$0xff]
    %v184 = vld [vmem:[#allocation8] sm:$0xff]
    %v185 = vld [vmem:[#allocation8 + $0x8] sm:$0x3]
    %vm186 = vcmask 80896
    %v188 = vsel %vm186, %v182, 0
    %v191 = vsel %vm186, %v183, 0
    %vm193 = vcmask 1041408
    %v195 = vsel %vm193, %v185, 0
    %197 = vmatpush.msra.mxu0 0.0
    %198 = vmatpush.msra.mxu0 0.0
    %199 = vmatpush.msra.mxu0 0.0
    %200 = vmatpush.msra.mxu0 0.0
    %201 = vmatpush.msra.mxu0 0.0
    %202 = vmatpush.msra.mxu0 0.0
    %203 = vmatpush.msra.mxu0 0.0
    %204 = vmatpush.msra.mxu0 0.0
    %205 = vmatpush.msra.mxu0 0.0
    %206 = vmatpush.msra.mxu0 0.0
    %207 = vmatpush.msra.mxu0 0.0
    %208 = vmatpush.msra.mxu0 0.0
    %209 = vmatpush.msra.mxu0 0.0
    %210 = vmatpush.msra.mxu0 0.0
    %211 = vmatpush.msra.mxu0 %v195
    %212 = vmatpush.msra.mxu0 %v184
    %213 = vmatmul.f32.gmra.mxu0 %v188
    %v214 = vpop.f32.mrf.mxu0
    %v215 = vadd.f32 0.0, %v214
    %216 = vmatmul.f32.gmra.mxu0 %v191
    %v217 = vpop.f32.mrf.mxu0
    %v218 = vadd.f32 0.0, %v217
    %219 = vdwg.mxu0
    %vm220 = vcmask 195584
    %v222 = vsel %vm220, %v177, 0
    %v225 = vsel %vm220, %v178, 0
    %227 = vmatpush.msra.mxu0 0.0
    %228 = vmatpush.msra.mxu0 0.0
    %229 = vmatpush.msra.mxu0 0.0
    %230 = vmatpush.msra.mxu0 0.0
    %231 = vmatpush.msra.mxu0 0.0
    %232 = vmatpush.msra.mxu0 0.0
    %233 = vmatpush.msra.mxu0 0.0
    %234 = vmatpush.msra.mxu0 0.0
    %235 = vmatpush.msra.mxu0 0.0
    %236 = vmatpush.msra.mxu0 0.0
    %237 = vmatpush.msra.mxu0 0.0
    %238 = vmatpush.msra.mxu0 0.0
    %239 = vmatpush.msra.mxu0 0.0
    %240 = vmatpush.msra.mxu0 %v181
    %241 = vmatpush.msra.mxu0 %v180
    %242 = vmatpush.msra.mxu0 %v179
    %243 = vmatmul.f32.gmra.mxu0 %v222
    %v244 = vpop.f32.mrf.mxu0
    %v245 = vadd.f32 %v215, %v244
    %246 = vmatmul.f32.gmra.mxu0 %v225
    %v247 = vpop.f32.mrf.mxu0
    %v248 = vadd.f32 %v218, %v247
    %249 = vdwg.mxu0
    %v250 = vld [vmem:[%s2] sm:$0xff]
    %v251 = vld [vmem:[%s2 + $0x8] sm:$0xff]
    %v252 = vld [vmem:[#allocation10] sm:$0x3f]
    %vm253 = vcmask 48128
    %v255 = vsel %vm253, %v250, 0
    %v258 = vsel %vm253, %v251, 0
    %vm260 = vcmask 1045504
    %v262 = vsel %vm260, %v252, 0
    %264 = vmatpush.msra.mxu0 0.0
    %265 = vmatpush.msra.mxu0 0.0
    %266 = vmatpush.msra.mxu0 0.0
    %267 = vmatpush.msra.mxu0 0.0
    %268 = vmatpush.msra.mxu0 0.0
    %269 = vmatpush.msra.mxu0 0.0
    %270 = vmatpush.msra.mxu0 0.0
    %271 = vmatpush.msra.mxu0 0.0
    %272 = vmatpush.msra.mxu0 0.0
    %273 = vmatpush.msra.mxu0 0.0
    %274 = vmatpush.msra.mxu0 0.0
    %275 = vmatpush.msra.mxu0 0.0
    %276 = vmatpush.msra.mxu0 0.0
    %277 = vmatpush.msra.mxu0 0.0
    %278 = vmatpush.msra.mxu0 0.0
    %279 = vmatpush.msra.mxu0 %v262
    %280 = vmatmul.f32.gmra.mxu0 %v255
    %v281 = vpop.f32.mrf.mxu0
    %v282 = vadd.f32 0.0, %v281
    %283 = vmatmul.f32.gmra.mxu0 %v258
    %v284 = vpop.f32.mrf.mxu0
    %v285 = vadd.f32 0.0, %v284
    %286 = vdwg.mxu0
    %v287 = vadd.f32 %v245, %v282
    %v288 = vadd.f32 %v248, %v285
    %v289 = vld [vmem:[#allocation11] sm:$0x1]
    %v291 = vperm.slane %v289, 0
    %v293 = vadd.f32 %v287, %v291
    %v294 = vadd.f32 %v288, %v291
    %vm295 = vcmask 261120
    %v296 = vsel %vm295, %v293, 0.0
    %297 = vadd.xlane.f32.xlu0 %v296
    %v298 = vpop.xlane.xlu0 %297
    %v299 = vsel %vm295, %v294, 0.0
    %300 = vadd.xlane.f32.xlu0 %v299
    %v301 = vpop.xlane.xlu0 %300
    %v302 = vrcp.pop 32.0
    %v303 = vmul.f32 32.0, %v302
    %v304 = vsub.f32 1.0, %v303
    %v305 = vmul.f32 %v302, %v304
    %v306 = vadd.f32 %v302, %v305
    %vm307 = vweird.f32 %v302
    %v308 = vsel %vm307, %v302, %v306
    %v309 = vmul.f32 %v298, %v308
    %v310 = vmul.f32 %v301, %v308
    %v311 = vsub.f32 %v293, %v309
    %v312 = vsub.f32 %v294, %v310
    %v313 = vmul.f32 %v311, %v311
    %v314 = vmul.f32 %v312, %v312
    %v315 = vsel %vm295, %v313, 0.0
    %316 = vadd.xlane.f32.xlu0 %v315
    %v317 = vpop.xlane.xlu0 %316
    %v318 = vsel %vm295, %v314, 0.0
    %319 = vadd.xlane.f32.xlu0 %v318
    %v320 = vpop.xlane.xlu0 %319
    %v321 = vmul.f32 %v317, %v308
    %v322 = vmul.f32 %v320, %v308
    %v323 = vadd.f32 %v321, 1e-05
    %v324 = vadd.f32 %v322, 1e-05
    %v325 = vrsqrt.pop %v323
    %v326 = vmul.f32 %v325, %v323
    %v327 = vmul.f32 %v326, %v325
    %v328 = vmul.f32 0.5, %v327
    %v329 = vsub.f32 1.5, %v328
    %v330 = vmul.f32 %v325, %v329
    %vm331 = vweird.f32 %v323
    %vm332 = vweird.f32 %v325
    %vm333 = vmor %vm331, %vm332
    %v334 = vsel %vm333, %v325, %v330
    %v335 = vrsqrt.pop %v324
    %v336 = vmul.f32 %v335, %v324
    %v337 = vmul.f32 %v336, %v335
    %v338 = vmul.f32 0.5, %v337
    %v339 = vsub.f32 1.5, %v338
    %v340 = vmul.f32 %v335, %v339
    %vm341 = vweird.f32 %v324
    %vm342 = vweird.f32 %v335
    %vm343 = vmor %vm341, %vm342
    %v344 = vsel %vm343, %v335, %v340
    %v345 = vmul.f32 %v311, %v334
    %v346 = vmul.f32 %v312, %v344
    %v347 = vld [vmem:[#allocation13] sm:$0x1]
    %v349 = vperm.slane %v347, 0
    %v351 = vmul.f32 %v345, %v349
    %v352 = vmul.f32 %v346, %v349
    %v353 = vld [vmem:[#allocation14] sm:$0x1]
    %v355 = vperm.slane %v353, 0
    %v357 = vadd.f32 %v351, %v355
    %v358 = vadd.f32 %v352, %v355
    %v359 = vtanh.pop %v357
    %v360 = vtanh.pop %v358
    %v361 = vld [vmem:[%s9] sm:$0xff]
    %v362 = vld [vmem:[%s9 + $0x8] sm:$0xff]
    %v363 = vld [vmem:[%s9 + $0x10] sm:$0xff]
    %v364 = vld [vmem:[%s9 + $0x18] sm:$0xff]
    %v365 = vld [vmem:[%s10] sm:$0x1]
    %v367 = vperm.slane %v365, 0
    %v370 = vsel %vm295, %v359, 0
    %v373 = vsel %vm295, %v360, 0
    %375 = vmatpush.msra.mxu0 0.0
    %376 = vmatpush.msra.mxu0 0.0
    %377 = vmatpush.msra.mxu0 0.0
    %378 = vmatpush.msra.mxu0 0.0
    %379 = vmatpush.msra.mxu0 0.0
    %380 = vmatpush.msra.mxu0 0.0
    %381 = vmatpush.msra.mxu0 0.0
    %382 = vmatpush.msra.mxu0 0.0
    %383 = vmatpush.msra.mxu0 0.0
    %384 = vmatpush.msra.mxu0 0.0
    %385 = vmatpush.msra.mxu0 0.0
    %386 = vmatpush.msra.mxu0 0.0
    %387 = vmatpush.msra.mxu0 %v364
    %388 = vmatpush.msra.mxu0 %v363
    %389 = vmatpush.msra.mxu0 %v362
    %390 = vmatpush.msra.mxu0 %v361
    %391 = vmatmul.f32.gmra.mxu0 %v370
    %v392 = vpop.f32.mrf.mxu0
    %v393 = vadd.f32 %v367, %v392
    %394 = vmatmul.f32.gmra.mxu0 %v373
    %v395 = vpop.f32.mrf.mxu0
    %v396 = vadd.f32 %v367, %v395
    %397 = vdwg.mxu0
    %v398 = vmax.f32 %v393, 0.0
    %v399 = vmax.f32 %v396, 0.0
    %v400 = vld [vmem:[#allocation16] sm:$0xff]
    %v401 = vld [vmem:[#allocation16 + $0x8] sm:$0xff]
    %v402 = vld [vmem:[#allocation16 + $0x10] sm:$0xff]
    %v403 = vld [vmem:[#allocation16 + $0x18] sm:$0xff]
    %v404 = vld [vmem:[#allocation16 + $0x20] sm:$0xff]
    %v405 = vld [vmem:[#allocation16 + $0x28] sm:$0xff]
    %v406 = vld [vmem:[#allocation16 + $0x30] sm:$0xff]
    %v407 = vld [vmem:[#allocation16 + $0x38] sm:$0xff]
    %v408 = vld [vmem:[%s12] sm:$0x1]
    %v410 = vperm.slane %v408, 0
    %vm412 = vcmask 523264
    %v414 = vsel %vm412, %v398, 0
    %v417 = vsel %vm412, %v399, 0
    %419 = vmatpush.msra.mxu0 0.0
    %420 = vmatpush.msra.mxu0 0.0
    %421 = vmatpush.msra.mxu0 0.0
    %422 = vmatpush.msra.mxu0 0.0
    %423 = vmatpush.msra.mxu0 0.0
    %424 = vmatpush.msra.mxu0 0.0
    %425 = vmatpush.msra.mxu0 0.0
    %426 = vmatpush.msra.mxu0 0.0
    %427 = vmatpush.msra.mxu0 %v407
    %428 = vmatpush.msra.mxu0 %v406
    %429 = vmatpush.msra.mxu0 %v405
    %430 = vmatpush.msra.mxu0 %v404
    %431 = vmatpush.msra.mxu0 %v403
    %432 = vmatpush.msra.mxu0 %v402
    %433 = vmatpush.msra.mxu0 %v401
    %434 = vmatpush.msra.mxu0 %v400
    %435 = vmatmul.f32.gmra.mxu0 %v414
    %v436 = vpop.f32.mrf.mxu0
    %v437 = vadd.f32 %v410, %v436
    %438 = vmatmul.f32.gmra.mxu0 %v417
    %v439 = vpop.f32.mrf.mxu0
    %v440 = vadd.f32 %v410, %v439
    %441 = vdwg.mxu0
    %442 = vst [vmem:[#allocation17] sm:$0xff] %v437
    %443 = vst [vmem:[#allocation17 + $0x8] sm:$0xff] %v440
    // Predicated region
    $region90: #{tpu_custom_call.1} parent=1 // pred_check
      _
    $region91: #{tpu_custom_call.1} parent=1 // pred_check_branch
      %445 = sbr.rel (0) target = $region93
    $region92: #{tpu_custom_call.1} parent=1 // pred_region
      %447 = vsyncadd [#allocation4], 0
      %s448 = sshll.u32 [#allocation17], 4
      %s449 = int_to_ptr.vmem [resolvable:$true] %s448
      %s450 = sshll.u32 %s13, 4
      %s451 = int_to_ptr.hbm [resolvable:$true] %s450
      %456 = dma.vmem_to_hbm [thread:$0]  %s449, 256, %s451, [#allocation4], 128, 128, 8
    $region93: #{tpu_custom_call.1} parent=1 // pred_fallthru
      _
    // Predicated region
    $region94: #{tpu_custom_call.1} parent=1 // pred_check
      _
    $region95: #{tpu_custom_call.1} parent=1 // pred_check_branch
      %458 = sbr.rel (0) target = $region97
    $region96: #{tpu_custom_call.1} parent=1 // pred_region
      %460 = dma.done [#allocation4], 256
    $region97: #{tpu_custom_call.1} parent=1 // pred_fallthru
      _
    %461 = vsyncpa [#allocation3], 1
    %462 = vsyncpa [#allocation6], 1
    %463 = vsyncpa [#allocation9], 1
    %464 = vsyncpa [#allocation12], 1
    %465 = vsyncpa [#allocation15], 1
    %466 = vsyncpa [#allocation4], 1

</llo_original>
